<compile_context>
chip_gen: v7x
topology: tpu7x:2x2x1
jax: 0.10.0
libtpu: 0.0.40
codegen_flags: <defaults>
</compile_context>

<pallas_src>
import functools

import jax
import jax.numpy as jnp
from jax.experimental import pallas as pl
from jax.experimental.pallas import tpu as pltpu


def _attnpool_kernel(x_ref, pos_ref, wq_ref, bq_ref, wk_ref, bk_ref,
                     wv_ref, bv_ref, wo_ref, bo_ref, out_ref, *, num_heads):
    # x_ref:   (HW, B, C) f32   B = batch tile (multiple of 8)
    # pos_ref: (L, C)     f32   L = HW + 2
    # wq/wk/wv_ref: (C, C) bf16 (transposed to (in, out); wq pre-scaled)
    # wo_ref:  (C, Do)    bf16
    # b*_ref:  (1, C)/(1, Do) f32 (bq pre-scaled)
    # out_ref: (2, B, Do) f32   attended rows 0/1 for each item in the tile
    HW, B, C = x_ref.shape
    L = HW + 2
    H = num_heads
    Dh = C // H

    xb = x_ref[...]                                     # (HW, B, C)
    pos = pos_ref[...]                                  # (L, C)

    # sequence [mean, mean, x] + positional embedding, built in registers
    mean = jnp.mean(xb, axis=0, keepdims=True)          # (1, B, C)
    xp = jnp.concatenate([mean, mean, xb], axis=0) + pos[:, None, :]   # (L, B, C)
    xp_bf = xp.reshape(L * B, C).astype(jnp.bfloat16)   # free reshape (B % 8 == 0)

    # projections: bf16 inputs, f32 accumulation.  Only the first 2*B rows
    # (the two mean rows of every item) are needed for q.
    q = jnp.dot(xp_bf[:2 * B, :], wq_ref[...],
                preferred_element_type=jnp.float32) + bq_ref[...]      # (2B, C)
    k = jnp.dot(xp_bf, wk_ref[...],
                preferred_element_type=jnp.float32) + bk_ref[...]      # (LB, C)
    v = jnp.dot(xp_bf, wv_ref[...],
                preferred_element_type=jnp.float32) + bv_ref[...]      # (LB, C)
    q4 = q.reshape(2, 1, B, C)                           # broadcast vs (·, L, B, C)
    k3 = k.reshape(L, B, C)
    v3 = v.reshape(L, B, C)

    # One-hot head-selection masks (channel c belongs to head c // Dh), built
    # with iota+compare only (cheap VPU, no integer div, no XLU transpose).
    # Kept f32: these matmuls are tiny and carry the softmax logits/probs.
    c_idx = jax.lax.broadcasted_iota(jnp.int32, (C, H), 0)
    h_lo = jax.lax.broadcasted_iota(jnp.int32, (C, H), 1) * Dh
    m_ch = ((c_idx >= h_lo) & (c_idx < h_lo + Dh)).astype(jnp.float32)   # (C, H)
    c_idx_t = jax.lax.broadcasted_iota(jnp.int32, (H, C), 1)
    h_lo_t = jax.lax.broadcasted_iota(jnp.int32, (H, C), 0) * Dh
    m_hc = ((c_idx_t >= h_lo_t) & (c_idx_t < h_lo_t + Dh)).astype(jnp.float32)  # (H, C)

    # Both query rows in one pass.
    # per-head scores: VPU broadcast-multiply, then a lane-segmented reduction
    # over each head's Dh channels via the one-hot mask (MXU).
    e = (q4 * k3[None, :, :, :]).reshape(2 * L * B, C)   # (2LB, C)
    s = jnp.dot(e, m_ch,
                preferred_element_type=jnp.float32).reshape(2, L, B, H)
    s = s - jnp.max(s, axis=1, keepdims=True)
    p = jnp.exp(s)                                       # (2, L, B, H)
    p = p * pl.reciprocal(jnp.sum(p, axis=1, keepdims=True), approx=True)
    # expand head probabilities back to channels; reduce over keys (axis 1)
    pexp = jnp.dot(p.reshape(2 * L * B, H), m_hc,
                   preferred_element_type=jnp.float32).reshape(2, L, B, C)
    attn = jnp.sum(pexp * v3[None, :, :, :], axis=1)     # (2, B, C)
    attn = attn.reshape(2 * B, C).astype(jnp.bfloat16)   # lane-dense slab

    out = jnp.dot(attn, wo_ref[...],
                  preferred_element_type=jnp.float32) + bo_ref[...]     # (2B, Do)
    out_ref[...] = out.reshape(out_ref.shape).astype(out_ref.dtype)


@functools.partial(jax.jit, static_argnames=("num_heads", "batch_tile"))
def attention_pool_2d(x_nchw, params, *, num_heads, batch_tile=8):
    """Pallas implementation of AttentionPool2d.forward (after `change()`).

    Returns (out[0], out[1]) = (cls_featvecs, bg_featvecs), each (N, Do)."""
    N, C, H, W = x_nchw.shape
    HW = H * W
    L = HW + 2
    Do = params["wo"].shape[0]
    Dh = C // num_heads
    scale = Dh ** -0.5
    bt = batch_tile

    # NCHW -> (HW, N, C) sequence-major, channel-last (lane-dense).
    x = x_nchw.reshape(N, C, HW).transpose(2, 0, 1).astype(jnp.float32)
    n_pad = (-N) % bt
    if n_pad:
        x = jnp.pad(x, ((0, 0), (0, n_pad), (0, 0)))
    n_full = N + n_pad

    # parameter prep: transpose to (in, out), fold 1/sqrt(Dh) into wq/bq,
    # cast weights to bf16 (biases / pos stay f32 and are added post-matmul).
    pos = params["pos"].astype(jnp.float32)                 # (L, C)
    wq_t = (params["wq"].T * scale).astype(jnp.bfloat16)    # (C, C)
    wk_t = params["wk"].T.astype(jnp.bfloat16)
    wv_t = params["wv"].T.astype(jnp.bfloat16)
    wo_t = params["wo"].T.astype(jnp.bfloat16)              # (C, Do)
    bq = (params["bq"] * scale).reshape(1, C).astype(jnp.float32)
    bk = params["bk"].reshape(1, C).astype(jnp.float32)
    bv = params["bv"].reshape(1, C).astype(jnp.float32)
    bo = params["bo"].reshape(1, Do).astype(jnp.float32)

    const = dict(pipeline_mode=pl.Buffered(1))   # grid-invariant: single buffer

    out = pl.pallas_call(
        functools.partial(_attnpool_kernel, num_heads=num_heads),
        out_shape=jax.ShapeDtypeStruct((2, n_full, Do), jnp.float32),
        grid_spec=pltpu.PrefetchScalarGridSpec(
            num_scalar_prefetch=0,
            grid=(n_full // bt,),
            in_specs=[
                pl.BlockSpec((HW, bt, C), lambda i: (0, i, 0)),       # x
                pl.BlockSpec((L, C), lambda i: (0, 0), **const),      # pos
                pl.BlockSpec((C, C), lambda i: (0, 0), **const),      # wq^T * scale
                pl.BlockSpec((1, C), lambda i: (0, 0), **const),      # bq * scale
                pl.BlockSpec((C, C), lambda i: (0, 0), **const),      # wk^T
                pl.BlockSpec((1, C), lambda i: (0, 0), **const),      # bk
                pl.BlockSpec((C, C), lambda i: (0, 0), **const),      # wv^T
                pl.BlockSpec((1, C), lambda i: (0, 0), **const),      # bv
                pl.BlockSpec((C, Do), lambda i: (0, 0), **const),     # wo^T
                pl.BlockSpec((1, Do), lambda i: (0, 0), **const),     # bo
            ],
            out_specs=pl.BlockSpec((2, bt, Do), lambda i: (0, i, 0)),
        ),
        compiler_params=pltpu.CompilerParams(
            dimension_semantics=("parallel",),
            vmem_limit_bytes=64 * 1024 * 1024,
        ),
    )(x, pos, wq_t, bq, wk_t, bk, wv_t, bv, wo_t, bo)

    return out[0, :N, :], out[1, :N, :]


def attention_pool_2d_ref(x_nchw, params, num_heads):
    """Pure-JAX f32 reference mirroring torch F.multi_head_attention_forward."""
    N, C, H, W = x_nchw.shape
    x = x_nchw.reshape(N, C, H * W).transpose(2, 0, 1).astype(jnp.float32)  # (HW, N, C)
    mean = jnp.mean(x, axis=0, keepdims=True)
    x = jnp.concatenate([mean, mean, x], axis=0)                            # (L, N, C)
    x = x + params["pos"][:, None, :]
    L = x.shape[0]
    Dh = C // num_heads
    scale = Dh ** -0.5
    q = (jnp.einsum("lnc,dc->lnd", x, params["wq"]) + params["bq"]) * scale
    k = jnp.einsum("lnc,dc->lnd", x, params["wk"]) + params["bk"]
    v = jnp.einsum("lnc,dc->lnd", x, params["wv"]) + params["bv"]
    q = q.reshape(L, N, num_heads, Dh)
    k = k.reshape(L, N, num_heads, Dh)
    v = v.reshape(L, N, num_heads, Dh)
    s = jnp.einsum("qnhd,knhd->nhqk", q, k)
    p = jax.nn.softmax(s, axis=-1)
    o = jnp.einsum("nhqk,knhd->qnhd", p, v).reshape(L, N, C)
    out = jnp.einsum("lnc,oc->lno", o, params["wo"]) + params["bo"]
    return out[0], out[1]


def init_params(key, spacial_dim, embed_dim, output_dim):
    """Deterministic synthetic parameters; mirrors AttentionPool2d.__init__ +
    change() (which duplicates positional_embedding row 0)."""
    ks = jax.random.split(key, 9)
    C, Do = embed_dim, output_dim
    pos_base = jax.random.normal(ks[0], (spacial_dim ** 2 + 1, C),
                                 jnp.float32) / (C ** 0.5)
    pos = jnp.concatenate([pos_base[:1], pos_base], axis=0)     # (HW+2, C)
    params = {
        "pos": pos,
        "wq": 0.02 * jax.random.normal(ks[1], (C, C), jnp.float32),
        "bq": 0.02 * jax.random.normal(ks[2], (C,), jnp.float32),
        "wk": 0.02 * jax.random.normal(ks[3], (C, C), jnp.float32),
        "bk": 0.02 * jax.random.normal(ks[4], (C,), jnp.float32),
        "wv": 0.02 * jax.random.normal(ks[5], (C, C), jnp.float32),
        "bv": 0.02 * jax.random.normal(ks[6], (C,), jnp.float32),
        "wo": 0.02 * jax.random.normal(ks[7], (Do, C), jnp.float32),
        "bo": 0.02 * jax.random.normal(ks[8], (Do,), jnp.float32),
    }
    return params


if __name__ == "__main__":
    # Small shapes consistent with the module (real model: 7, 2048, 32, 1024).
    SPACIAL = 4        # -> HW = 16, seq L = 18
    EMBED = 128
    HEADS = 4
    OUT = 64
    BATCH = 10         # exercises batch padding (pad to 16) + a 2-step grid

    key = jax.random.PRNGKey(0)
    kx, kp = jax.random.split(key)
    params = init_params(kp, SPACIAL, EMBED, OUT)
    x = jax.random.normal(kx, (BATCH, EMBED, SPACIAL, SPACIAL), jnp.float32)

    cls_vec, bg_vec = attention_pool_2d(x, params, num_heads=HEADS)
    cls_vec = jax.block_until_ready(cls_vec)
    bg_vec = jax.block_until_ready(bg_vec)

    # verify against the pure-JAX f32 reference (tolerance loosened slightly
    # because the kernel uses bf16 matmul inputs, like the fp16 original)
    cls_ref, bg_ref = attention_pool_2d_ref(x, params, HEADS)
    assert cls_vec.shape == (BATCH, OUT) and bg_vec.shape == (BATCH, OUT)
    assert jnp.allclose(cls_vec, cls_ref, atol=1e-2, rtol=1e-2)
    assert jnp.allclose(bg_vec, bg_ref, atol=1e-2, rtol=1e-2)

    print("KERNEL_OK")
</pallas_src>

<mosaic_0001>
module attributes {stable_mosaic.version = 11 : i64} {
  func.func @_attnpool_kernel(%arg0: i32, %arg1: memref<16x8x128xf32, #tpu.memory_space<vmem>>, %arg2: memref<18x128xf32, #tpu.memory_space<vmem>>, %arg3: memref<128x128xbf16, #tpu.memory_space<vmem>>, %arg4: memref<1x128xf32, #tpu.memory_space<vmem>>, %arg5: memref<128x128xbf16, #tpu.memory_space<vmem>>, %arg6: memref<1x128xf32, #tpu.memory_space<vmem>>, %arg7: memref<128x128xbf16, #tpu.memory_space<vmem>>, %arg8: memref<1x128xf32, #tpu.memory_space<vmem>>, %arg9: memref<128x64xbf16, #tpu.memory_space<vmem>>, %arg10: memref<1x64xf32, #tpu.memory_space<vmem>>, %arg11: memref<2x8x64xf32, #tpu.memory_space<vmem>>) attributes {dimension_semantics = [#tpu.dimension_semantics<parallel>], iteration_bounds = array<i64: 2>, scalar_prefetch = 0 : i64, scratch_operands = 0 : i64, tpu.core_type = #tpu.core_type<tc>, window_params = [{transform_indices = @transform_0, window_bounds = array<i64: 16, 8, 128>}, {pipeline_mode = #tpu.pipeline_mode<synchronous>, transform_indices = @transform_1, window_bounds = array<i64: 18, 128>}, {pipeline_mode = #tpu.pipeline_mode<synchronous>, transform_indices = @transform_2, window_bounds = array<i64: 128, 128>}, {pipeline_mode = #tpu.pipeline_mode<synchronous>, transform_indices = @transform_3, window_bounds = array<i64: 1, 128>}, {pipeline_mode = #tpu.pipeline_mode<synchronous>, transform_indices = @transform_4, window_bounds = array<i64: 128, 128>}, {pipeline_mode = #tpu.pipeline_mode<synchronous>, transform_indices = @transform_5, window_bounds = array<i64: 1, 128>}, {pipeline_mode = #tpu.pipeline_mode<synchronous>, transform_indices = @transform_6, window_bounds = array<i64: 128, 128>}, {pipeline_mode = #tpu.pipeline_mode<synchronous>, transform_indices = @transform_7, window_bounds = array<i64: 1, 128>}, {pipeline_mode = #tpu.pipeline_mode<synchronous>, transform_indices = @transform_8, window_bounds = array<i64: 128, 64>}, {pipeline_mode = #tpu.pipeline_mode<synchronous>, transform_indices = @transform_9, window_bounds = array<i64: 1, 64>}, {transform_indices = @transform_10, window_bounds = array<i64: 2, 8, 64>}]} {
    %c0 = arith.constant 0 : index
    %c0_0 = arith.constant 0 : index
    %c0_1 = arith.constant 0 : index
    %0 = vector.load %arg1[%c0, %c0_0, %c0_1] : memref<16x8x128xf32, #tpu.memory_space<vmem>>, vector<16x8x128xf32>
    %c0_2 = arith.constant 0 : index
    %c0_3 = arith.constant 0 : index
    %1 = vector.load %arg2[%c0_2, %c0_3] : memref<18x128xf32, #tpu.memory_space<vmem>>, vector<18x128xf32>
    %cst = arith.constant dense<0.000000e+00> : vector<8x128xf32>
    %2 = vector.multi_reduction <add>, %0, %cst [0] : vector<16x8x128xf32> to vector<8x128xf32>
    %3 = vector.shape_cast %2 : vector<8x128xf32> to vector<1x8x128xf32>
    %cst_4 = arith.constant 1.600000e+01 : f32
    %4 = vector.broadcast %cst_4 : f32 to vector<1x8x128xf32>
    %5 = arith.divf %3, %4 : vector<1x8x128xf32>
    %6 = tpu.concatenate %5, %5, %0 in 0 : vector<1x8x128xf32>, vector<1x8x128xf32>, vector<16x8x128xf32> -> vector<18x8x128xf32>
    %7 = vector.shape_cast %1 : vector<18x128xf32> to vector<18x1x128xf32>
    %8 = vector.broadcast %7 : vector<18x1x128xf32> to vector<18x8x128xf32>
    %9 = arith.addf %6, %8 : vector<18x8x128xf32>
    %10 = vector.shape_cast %9 : vector<18x8x128xf32> to vector<144x128xf32>
    %11 = arith.truncf %10 : vector<144x128xf32> to vector<144x128xbf16>
    %12 = vector.extract_strided_slice %11 {offsets = [0, 0], sizes = [16, 128], strides = [1, 1]} : vector<144x128xbf16> to vector<16x128xbf16>
    %c0_5 = arith.constant 0 : index
    %c0_6 = arith.constant 0 : index
    %13 = vector.load %arg3[%c0_5, %c0_6] : memref<128x128xbf16, #tpu.memory_space<vmem>>, vector<128x128xbf16>
    %cst_7 = arith.constant dense<0.000000e+00> : vector<16x128xf32>
    %14 = tpu.matmul %12, %13, %cst_7 {dimension_numbers = #tpu.dot_dimension_numbers<[1], [0], [0], [1], [0, 0, 1, 1], [], []>} : vector<16x128xbf16>, vector<128x128xbf16>, vector<16x128xf32> -> vector<16x128xf32>
    %c0_8 = arith.constant 0 : index
    %c0_9 = arith.constant 0 : index
    %15 = vector.load %arg4[%c0_8, %c0_9] : memref<1x128xf32, #tpu.memory_space<vmem>>, vector<1x128xf32>
    %16 = vector.broadcast %15 : vector<1x128xf32> to vector<16x128xf32>
    %17 = arith.addf %14, %16 : vector<16x128xf32>
    %c0_10 = arith.constant 0 : index
    %c0_11 = arith.constant 0 : index
    %18 = vector.load %arg5[%c0_10, %c0_11] : memref<128x128xbf16, #tpu.memory_space<vmem>>, vector<128x128xbf16>
    %cst_12 = arith.constant dense<0.000000e+00> : vector<144x128xf32>
    %19 = tpu.matmul %11, %18, %cst_12 {dimension_numbers = #tpu.dot_dimension_numbers<[1], [0], [0], [1], [0, 0, 1, 1], [], []>} : vector<144x128xbf16>, vector<128x128xbf16>, vector<144x128xf32> -> vector<144x128xf32>
    %c0_13 = arith.constant 0 : index
    %c0_14 = arith.constant 0 : index
    %20 = vector.load %arg6[%c0_13, %c0_14] : memref<1x128xf32, #tpu.memory_space<vmem>>, vector<1x128xf32>
    %21 = vector.broadcast %20 : vector<1x128xf32> to vector<144x128xf32>
    %22 = arith.addf %19, %21 : vector<144x128xf32>
    %c0_15 = arith.constant 0 : index
    %c0_16 = arith.constant 0 : index
    %23 = vector.load %arg7[%c0_15, %c0_16] : memref<128x128xbf16, #tpu.memory_space<vmem>>, vector<128x128xbf16>
    %cst_17 = arith.constant dense<0.000000e+00> : vector<144x128xf32>
    %24 = tpu.matmul %11, %23, %cst_17 {dimension_numbers = #tpu.dot_dimension_numbers<[1], [0], [0], [1], [0, 0, 1, 1], [], []>} : vector<144x128xbf16>, vector<128x128xbf16>, vector<144x128xf32> -> vector<144x128xf32>
    %c0_18 = arith.constant 0 : index
    %c0_19 = arith.constant 0 : index
    %25 = vector.load %arg8[%c0_18, %c0_19] : memref<1x128xf32, #tpu.memory_space<vmem>>, vector<1x128xf32>
    %26 = vector.broadcast %25 : vector<1x128xf32> to vector<144x128xf32>
    %27 = arith.addf %24, %26 : vector<144x128xf32>
    %28 = vector.shape_cast %17 : vector<16x128xf32> to vector<2x1x8x128xf32>
    %29 = vector.shape_cast %22 : vector<144x128xf32> to vector<18x8x128xf32>
    %30 = vector.shape_cast %27 : vector<144x128xf32> to vector<18x8x128xf32>
    %31 = tpu.iota {dimensions = array<i32: 0>} : vector<128x4xi32>
    %32 = tpu.iota {dimensions = array<i32: 1>} : vector<128x4xi32>
    %c32_i32 = arith.constant 32 : i32
    %33 = vector.broadcast %c32_i32 : i32 to vector<128x4xi32>
    %34 = arith.muli %32, %33 : vector<128x4xi32>
    %35 = arith.cmpi sge, %31, %34 : vector<128x4xi32>
    %c32_i32_20 = arith.constant 32 : i32
    %36 = vector.broadcast %c32_i32_20 : i32 to vector<128x4xi32>
    %37 = arith.addi %34, %36 : vector<128x4xi32>
    %38 = arith.cmpi slt, %31, %37 : vector<128x4xi32>
    %39 = arith.andi %35, %38 : vector<128x4xi1>
    %40 = arith.extui %39 : vector<128x4xi1> to vector<128x4xi32>
    %41 = arith.sitofp %40 : vector<128x4xi32> to vector<128x4xf32>
    %42 = tpu.iota {dimensions = array<i32: 1>} : vector<4x128xi32>
    %43 = tpu.iota {dimensions = array<i32: 0>} : vector<4x128xi32>
    %c32_i32_21 = arith.constant 32 : i32
    %44 = vector.broadcast %c32_i32_21 : i32 to vector<4x128xi32>
    %45 = arith.muli %43, %44 : vector<4x128xi32>
    %46 = arith.cmpi sge, %42, %45 : vector<4x128xi32>
    %c32_i32_22 = arith.constant 32 : i32
    %47 = vector.broadcast %c32_i32_22 : i32 to vector<4x128xi32>
    %48 = arith.addi %45, %47 : vector<4x128xi32>
    %49 = arith.cmpi slt, %42, %48 : vector<4x128xi32>
    %50 = arith.andi %46, %49 : vector<4x128xi1>
    %51 = arith.extui %50 : vector<4x128xi1> to vector<4x128xi32>
    %52 = arith.sitofp %51 : vector<4x128xi32> to vector<4x128xf32>
    %53 = vector.shape_cast %29 : vector<18x8x128xf32> to vector<1x18x8x128xf32>
    %54 = vector.broadcast %28 : vector<2x1x8x128xf32> to vector<2x18x8x128xf32>
    %55 = vector.broadcast %53 : vector<1x18x8x128xf32> to vector<2x18x8x128xf32>
    %56 = arith.mulf %54, %55 : vector<2x18x8x128xf32>
    %57 = vector.shape_cast %56 : vector<2x18x8x128xf32> to vector<288x128xf32>
    %cst_23 = arith.constant dense<0.000000e+00> : vector<288x4xf32>
    %58 = tpu.matmul %57, %41, %cst_23 {dimension_numbers = #tpu.dot_dimension_numbers<[1], [0], [0], [1], [0, 0, 1, 1], [], []>} : vector<288x128xf32>, vector<128x4xf32>, vector<288x4xf32> -> vector<288x4xf32>
    %59 = vector.shape_cast %58 : vector<288x4xf32> to vector<2x18x8x4xf32>
    %cst_24 = arith.constant dense<0xFF800000> : vector<2x8x4xf32>
    %60 = vector.multi_reduction <maximumf>, %59, %cst_24 [1] : vector<2x18x8x4xf32> to vector<2x8x4xf32>
    %61 = vector.shape_cast %60 : vector<2x8x4xf32> to vector<2x1x8x4xf32>
    %62 = vector.broadcast %61 : vector<2x1x8x4xf32> to vector<2x18x8x4xf32>
    %63 = arith.subf %59, %62 : vector<2x18x8x4xf32>
    %64 = math.exp %63 : vector<2x18x8x4xf32>
    %cst_25 = arith.constant dense<0.000000e+00> : vector<2x8x4xf32>
    %65 = vector.multi_reduction <add>, %64, %cst_25 [1] : vector<2x18x8x4xf32> to vector<2x8x4xf32>
    %66 = vector.shape_cast %65 : vector<2x8x4xf32> to vector<2x1x8x4xf32>
    %67 = tpu.reciprocal %66 {approx = true} : vector<2x1x8x4xf32> -> vector<2x1x8x4xf32>
    %68 = vector.broadcast %67 : vector<2x1x8x4xf32> to vector<2x18x8x4xf32>
    %69 = arith.mulf %64, %68 : vector<2x18x8x4xf32>
    %70 = vector.shape_cast %69 : vector<2x18x8x4xf32> to vector<288x4xf32>
    %cst_26 = arith.constant dense<0.000000e+00> : vector<288x128xf32>
    %71 = tpu.matmul %70, %52, %cst_26 {dimension_numbers = #tpu.dot_dimension_numbers<[1], [0], [0], [1], [0, 0, 1, 1], [], []>} : vector<288x4xf32>, vector<4x128xf32>, vector<288x128xf32> -> vector<288x128xf32>
    %72 = vector.shape_cast %71 : vector<288x128xf32> to vector<2x18x8x128xf32>
    %73 = vector.shape_cast %30 : vector<18x8x128xf32> to vector<1x18x8x128xf32>
    %74 = vector.broadcast %73 : vector<1x18x8x128xf32> to vector<2x18x8x128xf32>
    %75 = arith.mulf %72, %74 : vector<2x18x8x128xf32>
    %cst_27 = arith.constant dense<0.000000e+00> : vector<2x8x128xf32>
    %76 = vector.multi_reduction <add>, %75, %cst_27 [1] : vector<2x18x8x128xf32> to vector<2x8x128xf32>
    %77 = vector.shape_cast %76 : vector<2x8x128xf32> to vector<16x128xf32>
    %78 = arith.truncf %77 : vector<16x128xf32> to vector<16x128xbf16>
    %c0_28 = arith.constant 0 : index
    %c0_29 = arith.constant 0 : index
    %79 = vector.load %arg9[%c0_28, %c0_29] : memref<128x64xbf16, #tpu.memory_space<vmem>>, vector<128x64xbf16>
    %cst_30 = arith.constant dense<0.000000e+00> : vector<16x64xf32>
    %80 = tpu.matmul %78, %79, %cst_30 {dimension_numbers = #tpu.dot_dimension_numbers<[1], [0], [0], [1], [0, 0, 1, 1], [], []>} : vector<16x128xbf16>, vector<128x64xbf16>, vector<16x64xf32> -> vector<16x64xf32>
    %c0_31 = arith.constant 0 : index
    %c0_32 = arith.constant 0 : index
    %81 = vector.load %arg10[%c0_31, %c0_32] : memref<1x64xf32, #tpu.memory_space<vmem>>, vector<1x64xf32>
    %82 = vector.broadcast %81 : vector<1x64xf32> to vector<16x64xf32>
    %83 = arith.addf %80, %82 : vector<16x64xf32>
    %84 = vector.shape_cast %83 : vector<16x64xf32> to vector<2x8x64xf32>
    %c0_33 = arith.constant 0 : index
    %c0_34 = arith.constant 0 : index
    %c0_35 = arith.constant 0 : index
    %85 = vector.load %arg11[%c0_33, %c0_34, %c0_35] : memref<2x8x64xf32, #tpu.memory_space<vmem>>, vector<2x8x64xf32>
    tpu.vector_store %arg11[%c0_33, %c0_34, %c0_35], %84 {strides = array<i32>} : memref<2x8x64xf32, #tpu.memory_space<vmem>>, vector<2x8x64xf32>,
    return
  }
  func.func @transform_0(%arg0: i32) -> (i32, i32, i32) {
    %c0_i32 = arith.constant 0 : i32
    %c0_i32_0 = arith.constant 0 : i32
    %c0_i32_1 = arith.constant 0 : i32
    return %c0_i32, %arg0, %c0_i32_0 : i32, i32, i32
  }
  func.func @transform_1(%arg0: i32) -> (i32, i32) {
    %c0_i32 = arith.constant 0 : i32
    %c0_i32_0 = arith.constant 0 : i32
    %c0_i32_1 = arith.constant 0 : i32
    return %c0_i32, %c0_i32_0 : i32, i32
  }
  func.func @transform_2(%arg0: i32) -> (i32, i32) {
    %c0_i32 = arith.constant 0 : i32
    %c0_i32_0 = arith.constant 0 : i32
    %c0_i32_1 = arith.constant 0 : i32
    return %c0_i32, %c0_i32_0 : i32, i32
  }
  func.func @transform_3(%arg0: i32) -> (i32, i32) {
    %c0_i32 = arith.constant 0 : i32
    %c0_i32_0 = arith.constant 0 : i32
    %c0_i32_1 = arith.constant 0 : i32
    return %c0_i32, %c0_i32_0 : i32, i32
  }
  func.func @transform_4(%arg0: i32) -> (i32, i32) {
    %c0_i32 = arith.constant 0 : i32
    %c0_i32_0 = arith.constant 0 : i32
    %c0_i32_1 = arith.constant 0 : i32
    return %c0_i32, %c0_i32_0 : i32, i32
  }
  func.func @transform_5(%arg0: i32) -> (i32, i32) {
    %c0_i32 = arith.constant 0 : i32
    %c0_i32_0 = arith.constant 0 : i32
    %c0_i32_1 = arith.constant 0 : i32
    return %c0_i32, %c0_i32_0 : i32, i32
  }
  func.func @transform_6(%arg0: i32) -> (i32, i32) {
    %c0_i32 = arith.constant 0 : i32
    %c0_i32_0 = arith.constant 0 : i32
    %c0_i32_1 = arith.constant 0 : i32
    return %c0_i32, %c0_i32_0 : i32, i32
  }
  func.func @transform_7(%arg0: i32) -> (i32, i32) {
    %c0_i32 = arith.constant 0 : i32
    %c0_i32_0 = arith.constant 0 : i32
    %c0_i32_1 = arith.constant 0 : i32
    return %c0_i32, %c0_i32_0 : i32, i32
  }
  func.func @transform_8(%arg0: i32) -> (i32, i32) {
    %c0_i32 = arith.constant 0 : i32
    %c0_i32_0 = arith.constant 0 : i32
    %c0_i32_1 = arith.constant 0 : i32
    return %c0_i32, %c0_i32_0 : i32, i32
  }
  func.func @transform_9(%arg0: i32) -> (i32, i32) {
    %c0_i32 = arith.constant 0 : i32
    %c0_i32_0 = arith.constant 0 : i32
    %c0_i32_1 = arith.constant 0 : i32
    return %c0_i32, %c0_i32_0 : i32, i32
  }
  func.func @transform_10(%arg0: i32) -> (i32, i32, i32) {
    %c0_i32 = arith.constant 0 : i32
    %c0_i32_0 = arith.constant 0 : i32
    %c0_i32_1 = arith.constant 0 : i32
    return %c0_i32, %arg0, %c0_i32_0 : i32, i32, i32
  }
}

</mosaic_0001>

<llo_original>
// kernel: attention_pool_2d.1
$region0: #{attention_pool_2d.1}
  #allocation0 [shape = 'u32[]', space=smem, size = 0x4, offset = 0x4, fixed_abs, tag = 'smem constant byte address 0x4 - core index']
  #allocation1 [shape = 'u32[144,128]{1,0:T(1,128)}', space=vmem, size = 0x12000, scoped, tag = 'internal scratch']
  %s0 = inlined_call_operand.hbm [shape: f32[16,16,128], index: 0, kind: input, shape index: {}]
  %s1 = inlined_call_operand.hbm [shape: f32[18,128], index: 1, kind: input, shape index: {}]
  %s2 = inlined_call_operand.hbm [shape: bf16[128,128], index: 2, kind: input, shape index: {}]
  %s3 = inlined_call_operand.hbm [shape: f32[1,128], index: 3, kind: input, shape index: {}]
  %s4 = inlined_call_operand.hbm [shape: bf16[128,128], index: 4, kind: input, shape index: {}]
  %s5 = inlined_call_operand.hbm [shape: f32[1,128], index: 5, kind: input, shape index: {}]
  %s6 = inlined_call_operand.hbm [shape: bf16[128,128], index: 6, kind: input, shape index: {}]
  %s7 = inlined_call_operand.hbm [shape: f32[1,128], index: 7, kind: input, shape index: {}]
  %s8 = inlined_call_operand.hbm [shape: bf16[128,64], index: 8, kind: input, shape index: {}]
  %s9 = inlined_call_operand.hbm [shape: f32[1,64], index: 9, kind: input, shape index: {}]
  %s10 = inlined_call_operand.hbm [shape: f32[2,16,64], index: 10, kind: output, shape index: {}]
  %s11 = sld [smem:[#allocation0]]
  $region113: #{attention_pool_2d.1} parent=0
    _
  %s13 = ssub.s32 1, %s11
  %s14 = scalar_select 0, %s13, %s11
  $region1: #{attention_pool_2d.1} parent=0
    #allocation2 [shape = 'u8[131072]{0}', space=vmem, size = 0x20000, scoped, tag = 'input window, operand 0']
    #allocation3 [shape = 's32[2]{0}', space=sflag, size = 0x8, scoped, tag = 'scoped memory for attention_pool_2d.1']
    #allocation4 [shape = 's32[2]{0}', space=sflag, size = 0x8, scoped, tag = 'scoped memory for attention_pool_2d.1']
    #allocation5 [shape = 'u8[12288]{0}', space=vmem, size = 0x3000, scoped, tag = 'input window, operand 1, single buffered']
    #allocation6 [shape = 's32[1]{0}', space=sflag, size = 0x4, scoped, tag = 'scoped memory for attention_pool_2d.1']
    #allocation7 [shape = 'u8[32768]{0}', space=vmem, size = 0x8000, scoped, tag = 'input window, operand 2, single buffered']
    #allocation8 [shape = 'u8[512]{0}', space=vmem, size = 0x400, scoped, tag = 'input window, operand 3, single buffered']
    #allocation9 [shape = 's32[1]{0}', space=sflag, size = 0x4, scoped, tag = 'scoped memory for attention_pool_2d.1']
    #allocation10 [shape = 'u8[32768]{0}', space=vmem, size = 0x8000, scoped, tag = 'input window, operand 4, single buffered']
    #allocation11 [shape = 'u8[512]{0}', space=vmem, size = 0x400, scoped, tag = 'input window, operand 5, single buffered']
    #allocation12 [shape = 's32[1]{0}', space=sflag, size = 0x4, scoped, tag = 'scoped memory for attention_pool_2d.1']
    #allocation13 [shape = 'u8[32768]{0}', space=vmem, size = 0x8000, scoped, tag = 'input window, operand 6, single buffered']
    #allocation14 [shape = 'u8[512]{0}', space=vmem, size = 0x400, scoped, tag = 'input window, operand 7, single buffered']
    #allocation15 [shape = 's32[1]{0}', space=sflag, size = 0x4, scoped, tag = 'scoped memory for attention_pool_2d.1']
    #allocation16 [shape = 'u8[32768]{0}', space=vmem, size = 0x8000, scoped, tag = 'input window, operand 8, single buffered']
    #allocation17 [shape = 'u8[512]{0}', space=vmem, size = 0x400, scoped, tag = 'input window, operand 9, single buffered']
    #allocation18 [shape = 's32[1]{0}', space=sflag, size = 0x4, scoped, tag = 'scoped memory for attention_pool_2d.1']
    #allocation19 [shape = 'u8[16384]{0}', space=vmem, size = 0x4000, scoped, tag = 'output window, operand 0']
    %15 = vsyncpa [#allocation3], 0
    %s16 = scalar_lea.sflag [#allocation3], 1
    %17 = vsyncpa %s16, 0
    %18 = vsyncpa [#allocation6], 0
    %19 = vsyncpa [#allocation9], 0
    %20 = vsyncpa [#allocation12], 0
    %21 = vsyncpa [#allocation15], 0
    %22 = vsyncpa [#allocation18], 0
    %23 = vsyncpa [#allocation4], 0
    %s24 = scalar_lea.sflag [#allocation4], 1
    %25 = vsyncpa %s24, 0
    loop: start=0, step=1, limit=4
    $region2: #{attention_pool_2d.1} parent=1 // loop_pre_header
      _
    $region3: #{attention_pool_2d.1} parent=1 // loop_header
      %s27 = sphi 0, %s31
      %p28 = scmp.ge.s32.totalorder %s27, 4
      %s37 = sphi 0, %s39
      %s40 = sphi 0, %s37
      %s41 = sphi 0, %s40
      %s57 = sphi 0, %s41
      %s61 = sphi 0, %s61
      %s63 = sphi 0, %s61
      %s64 = sphi 0, %s63
      %s78 = sphi 0, %s64
      %s82 = sphi 0, %s82
      %s84 = sphi 0, %s82
      %s85 = sphi 0, %s84
      %s99 = sphi 0, %s85
      %s103 = sphi 0, %s103
      %s105 = sphi 0, %s103
      %s106 = sphi 0, %s105
      %s120 = sphi 0, %s106
      %s124 = sphi 0, %s124
      %s126 = sphi 0, %s124
      %s127 = sphi 0, %s126
      %s141 = sphi 0, %s127
      %s145 = sphi 0, %s145
      %s147 = sphi 0, %s145
      %s148 = sphi 0, %s147
      %s162 = sphi 0, %s148
      %s166 = sphi 0, %s166
      %s168 = sphi 0, %s166
      %s169 = sphi 0, %s168
      %s183 = sphi 0, %s169
      %s187 = sphi 0, %s187
      %s189 = sphi 0, %s187
      %s190 = sphi 0, %s189
      %s204 = sphi 0, %s190
      %s208 = sphi 0, %s208
      %s210 = sphi 0, %s208
      %s211 = sphi 0, %s210
      %s225 = sphi 0, %s211
      %s229 = sphi 0, %s229
      %s231 = sphi 0, %s229
      %s232 = sphi 0, %s231
      %s246 = sphi 0, %s232
      %s252 = sphi 0, %s254
      %s255 = sphi 0, %s252
      %s256 = sphi 0, %s255
      %s272 = sphi 0, %s256
    $region4: #{attention_pool_2d.1} parent=1 // loop_header_branch
      %30 = sbr.rel (%p28) target = $region8
    $region5: #{attention_pool_2d.1} parent=1 // loop_body
      %s32 = ssub.s32 %s27, 1
      %s33 = ssub.s32 %s27, 2
      %s34 = sadd.s32 %s27, 1
      %s35 = ssub.s32 %s27, %s34
      %p36 = scmp.eq.s32.totalorder %s35, 0
      %s38 = sadd.s32 %s37, 1
      %s39 = scalar_select %p36, %s37, %s38
      %p42 = pneg %p36
      %p43 = scmp.eq.s32.totalorder %s27, 1
      %p44 = por %p42, %p43
      %p45 = scmp.ne.s32.totalorder %s37, %s40
      %p46 = scmp.eq.s32.totalorder %s27, 0
      %p47 = por %p45, %p46
      %p48 = scmp.ne.s32.totalorder %s37, %s40
      %p49 = scmp.eq.s32.totalorder %s32, 1
      %p50 = por %p48, %p49
      %p51 = scmp.ne.s32.totalorder %s40, %s41
      %p52 = scmp.eq.s32.totalorder %s32, 0
      %p53 = por %p51, %p52
      %p54 = scmp.ne.s32.totalorder %s40, %s41
      %p55 = scmp.eq.s32.totalorder %s33, 1
      %p56 = por %p54, %p55
      %p58 = scmp.ne.s32.totalorder %s41, %s57
      %p59 = scmp.eq.s32.totalorder %s33, 0
      %p60 = por %p58, %p59
      %s62 = sadd.s32 %s61, 1
      %p65 = scmp.eq.s32.totalorder %s27, 1
      %p66 = scmp.ne.s32.totalorder %s61, %s63
      %p67 = scmp.eq.s32.totalorder %s27, 0
      %p68 = por %p66, %p67
      %p69 = scmp.ne.s32.totalorder %s61, %s63
      %p70 = scmp.eq.s32.totalorder %s32, 1
      %p71 = por %p69, %p70
      %p72 = scmp.ne.s32.totalorder %s63, %s64
      %p73 = scmp.eq.s32.totalorder %s32, 0
      %p74 = por %p72, %p73
      %p75 = scmp.ne.s32.totalorder %s63, %s64
      %p76 = scmp.eq.s32.totalorder %s33, 1
      %p77 = por %p75, %p76
      %p79 = scmp.ne.s32.totalorder %s64, %s78
      %p80 = scmp.eq.s32.totalorder %s33, 0
      %p81 = por %p79, %p80
      %s83 = sadd.s32 %s82, 1
      %p86 = scmp.eq.s32.totalorder %s27, 1
      %p87 = scmp.ne.s32.totalorder %s82, %s84
      %p88 = scmp.eq.s32.totalorder %s27, 0
      %p89 = por %p87, %p88
      %p90 = scmp.ne.s32.totalorder %s82, %s84
      %p91 = scmp.eq.s32.totalorder %s32, 1
      %p92 = por %p90, %p91
      %p93 = scmp.ne.s32.totalorder %s84, %s85
      %p94 = scmp.eq.s32.totalorder %s32, 0
      %p95 = por %p93, %p94
      %p96 = scmp.ne.s32.totalorder %s84, %s85
      %p97 = scmp.eq.s32.totalorder %s33, 1
      %p98 = por %p96, %p97
      %p100 = scmp.ne.s32.totalorder %s85, %s99
      %p101 = scmp.eq.s32.totalorder %s33, 0
      %p102 = por %p100, %p101
      %s104 = sadd.s32 %s103, 1
      %p107 = scmp.eq.s32.totalorder %s27, 1
      %p108 = scmp.ne.s32.totalorder %s103, %s105
      %p109 = scmp.eq.s32.totalorder %s27, 0
      %p110 = por %p108, %p109
      %p111 = scmp.ne.s32.totalorder %s103, %s105
      %p112 = scmp.eq.s32.totalorder %s32, 1
      %p113 = por %p111, %p112
      %p114 = scmp.ne.s32.totalorder %s105, %s106
      %p115 = scmp.eq.s32.totalorder %s32, 0
      %p116 = por %p114, %p115
      %p117 = scmp.ne.s32.totalorder %s105, %s106
      %p118 = scmp.eq.s32.totalorder %s33, 1
      %p119 = por %p117, %p118
      %p121 = scmp.ne.s32.totalorder %s106, %s120
      %p122 = scmp.eq.s32.totalorder %s33, 0
      %p123 = por %p121, %p122
      %s125 = sadd.s32 %s124, 1
      %p128 = scmp.eq.s32.totalorder %s27, 1
      %p129 = scmp.ne.s32.totalorder %s124, %s126
      %p130 = scmp.eq.s32.totalorder %s27, 0
      %p131 = por %p129, %p130
      %p132 = scmp.ne.s32.totalorder %s124, %s126
      %p133 = scmp.eq.s32.totalorder %s32, 1
      %p134 = por %p132, %p133
      %p135 = scmp.ne.s32.totalorder %s126, %s127
      %p136 = scmp.eq.s32.totalorder %s32, 0
      %p137 = por %p135, %p136
      %p138 = scmp.ne.s32.totalorder %s126, %s127
      %p139 = scmp.eq.s32.totalorder %s33, 1
      %p140 = por %p138, %p139
      %p142 = scmp.ne.s32.totalorder %s127, %s141
      %p143 = scmp.eq.s32.totalorder %s33, 0
      %p144 = por %p142, %p143
      %s146 = sadd.s32 %s145, 1
      %p149 = scmp.eq.s32.totalorder %s27, 1
      %p150 = scmp.ne.s32.totalorder %s145, %s147
      %p151 = scmp.eq.s32.totalorder %s27, 0
      %p152 = por %p150, %p151
      %p153 = scmp.ne.s32.totalorder %s145, %s147
      %p154 = scmp.eq.s32.totalorder %s32, 1
      %p155 = por %p153, %p154
      %p156 = scmp.ne.s32.totalorder %s147, %s148
      %p157 = scmp.eq.s32.totalorder %s32, 0
      %p158 = por %p156, %p157
      %p159 = scmp.ne.s32.totalorder %s147, %s148
      %p160 = scmp.eq.s32.totalorder %s33, 1
      %p161 = por %p159, %p160
      %p163 = scmp.ne.s32.totalorder %s148, %s162
      %p164 = scmp.eq.s32.totalorder %s33, 0
      %p165 = por %p163, %p164
      %s167 = sadd.s32 %s166, 1
      %p170 = scmp.eq.s32.totalorder %s27, 1
      %p171 = scmp.ne.s32.totalorder %s166, %s168
      %p172 = scmp.eq.s32.totalorder %s27, 0
      %p173 = por %p171, %p172
      %p174 = scmp.ne.s32.totalorder %s166, %s168
      %p175 = scmp.eq.s32.totalorder %s32, 1
      %p176 = por %p174, %p175
      %p177 = scmp.ne.s32.totalorder %s168, %s169
      %p178 = scmp.eq.s32.totalorder %s32, 0
      %p179 = por %p177, %p178
      %p180 = scmp.ne.s32.totalorder %s168, %s169
      %p181 = scmp.eq.s32.totalorder %s33, 1
      %p182 = por %p180, %p181
      %p184 = scmp.ne.s32.totalorder %s169, %s183
      %p185 = scmp.eq.s32.totalorder %s33, 0
      %p186 = por %p184, %p185
      %s188 = sadd.s32 %s187, 1
      %p191 = scmp.eq.s32.totalorder %s27, 1
      %p192 = scmp.ne.s32.totalorder %s187, %s189
      %p193 = scmp.eq.s32.totalorder %s27, 0
      %p194 = por %p192, %p193
      %p195 = scmp.ne.s32.totalorder %s187, %s189
      %p196 = scmp.eq.s32.totalorder %s32, 1
      %p197 = por %p195, %p196
      %p198 = scmp.ne.s32.totalorder %s189, %s190
      %p199 = scmp.eq.s32.totalorder %s32, 0
      %p200 = por %p198, %p199
      %p201 = scmp.ne.s32.totalorder %s189, %s190
      %p202 = scmp.eq.s32.totalorder %s33, 1
      %p203 = por %p201, %p202
      %p205 = scmp.ne.s32.totalorder %s190, %s204
      %p206 = scmp.eq.s32.totalorder %s33, 0
      %p207 = por %p205, %p206
      %s209 = sadd.s32 %s208, 1
      %p212 = scmp.eq.s32.totalorder %s27, 1
      %p213 = scmp.ne.s32.totalorder %s208, %s210
      %p214 = scmp.eq.s32.totalorder %s27, 0
      %p215 = por %p213, %p214
      %p216 = scmp.ne.s32.totalorder %s208, %s210
      %p217 = scmp.eq.s32.totalorder %s32, 1
      %p218 = por %p216, %p217
      %p219 = scmp.ne.s32.totalorder %s210, %s211
      %p220 = scmp.eq.s32.totalorder %s32, 0
      %p221 = por %p219, %p220
      %p222 = scmp.ne.s32.totalorder %s210, %s211
      %p223 = scmp.eq.s32.totalorder %s33, 1
      %p224 = por %p222, %p223
      %p226 = scmp.ne.s32.totalorder %s211, %s225
      %p227 = scmp.eq.s32.totalorder %s33, 0
      %p228 = por %p226, %p227
      %s230 = sadd.s32 %s229, 1
      %p233 = scmp.eq.s32.totalorder %s27, 1
      %p234 = scmp.ne.s32.totalorder %s229, %s231
      %p235 = scmp.eq.s32.totalorder %s27, 0
      %p236 = por %p234, %p235
      %p237 = scmp.ne.s32.totalorder %s229, %s231
      %p238 = scmp.eq.s32.totalorder %s32, 1
      %p239 = por %p237, %p238
      %p240 = scmp.ne.s32.totalorder %s231, %s232
      %p241 = scmp.eq.s32.totalorder %s32, 0
      %p242 = por %p240, %p241
      %p243 = scmp.ne.s32.totalorder %s231, %s232
      %p244 = scmp.eq.s32.totalorder %s33, 1
      %p245 = por %p243, %p244
      %p247 = scmp.ne.s32.totalorder %s232, %s246
      %p248 = scmp.eq.s32.totalorder %s33, 0
      %p249 = por %p247, %p248
      %s250 = ssub.s32 %s27, %s34
      %p251 = scmp.eq.s32.totalorder %s250, 0
      %s253 = sadd.s32 %s252, 1
      %s254 = scalar_select %p251, %s252, %s253
      %p257 = pneg %p251
      %p258 = scmp.eq.s32.totalorder %s27, 1
      %p259 = por %p257, %p258
      %p260 = scmp.ne.s32.totalorder %s252, %s255
      %p261 = scmp.eq.s32.totalorder %s27, 0
      %p262 = por %p260, %p261
      %p263 = scmp.ne.s32.totalorder %s252, %s255
      %p264 = scmp.eq.s32.totalorder %s32, 1
      %p265 = por %p263, %p264
      %p266 = scmp.ne.s32.totalorder %s255, %s256
      %p267 = scmp.eq.s32.totalorder %s32, 0
      %p268 = por %p266, %p267
      %p269 = scmp.ne.s32.totalorder %s255, %s256
      %p270 = scmp.eq.s32.totalorder %s33, 1
      %p271 = por %p269, %p270
      %p273 = scmp.ne.s32.totalorder %s256, %s272
      %p274 = scmp.eq.s32.totalorder %s33, 0
      %p275 = por %p273, %p274
      %p276 = scmp.le.s32.totalorder 1, %s27
      %p277 = scmp.lt.s32.totalorder %s27, 3
      %p278 = pnand %p276, %p277
      %p279 = pneg %p278
      // Predicated region
      $region9: #{attention_pool_2d.1} parent=5 // pred_check
        _
      $region10: #{attention_pool_2d.1} parent=5 // pred_check_branch
        %281 = sbr.rel (%p278) target = $region12
      $region11: #{attention_pool_2d.1} parent=5 // pred_region
        %s282 = ssub.s32 %s27, 1
        // Predicated region
        $region13: #{attention_pool_2d.1} parent=11 // pred_check
          %p283 = pneg %p74
        $region14: #{attention_pool_2d.1} parent=11 // pred_check_branch
          %285 = sbr.rel (%p283) target = $region16
        $region15: #{attention_pool_2d.1} parent=11 // pred_region
          %s287 = ssub.s32 384, 384
          %288 = vsyncadd [#allocation6], %s287
          %s289 = sshll.u32 [#allocation5], 4
          %s290 = int_to_ptr.vmem [resolvable:$true] %s289
          %295 = dma.hbm_to_vmem [thread:$0]  %s1, 384, %s290, [#allocation6], 128, 128, 8
        $region16: #{attention_pool_2d.1} parent=11 // pred_fallthru
          _
        // Predicated region
        $region17: #{attention_pool_2d.1} parent=11 // pred_check
          %p296 = pneg %p95
        $region18: #{attention_pool_2d.1} parent=11 // pred_check_branch
          %298 = sbr.rel (%p296) target = $region20
        $region19: #{attention_pool_2d.1} parent=11 // pred_region
          %s300 = ssub.s32 1024, 1024
          %301 = vsyncadd [#allocation6], %s300
          %s302 = sshll.u32 [#allocation7], 4
          %s303 = int_to_ptr.vmem [resolvable:$true] %s302
          %308 = dma.hbm_to_vmem [thread:$0]  %s2, 1024, %s303, [#allocation6], 64, 64, 4
        $region20: #{attention_pool_2d.1} parent=11 // pred_fallthru
          _
        // Predicated region
        $region21: #{attention_pool_2d.1} parent=11 // pred_check
          %p309 = pneg %p116
        $region22: #{attention_pool_2d.1} parent=11 // pred_check_branch
          %311 = sbr.rel (%p309) target = $region24
        $region23: #{attention_pool_2d.1} parent=11 // pred_region
          %s313 = ssub.s32 16, 16
          %314 = vsyncadd [#allocation9], %s313
          %s316 = sshll.u32 [#allocation8], 4
          %s317 = int_to_ptr.vmem [resolvable:$true] %s316
          %319 = dma.hbm_to_vmem [thread:$0]  %s3, 16, %s317, [#allocation9]
        $region24: #{attention_pool_2d.1} parent=11 // pred_fallthru
          _
        // Predicated region
        $region25: #{attention_pool_2d.1} parent=11 // pred_check
          %p320 = pneg %p137
        $region26: #{attention_pool_2d.1} parent=11 // pred_check_branch
          %322 = sbr.rel (%p320) target = $region28
        $region27: #{attention_pool_2d.1} parent=11 // pred_region
          %s324 = ssub.s32 1024, 1024
          %325 = vsyncadd [#allocation9], %s324
          %s326 = sshll.u32 [#allocation10], 4
          %s327 = int_to_ptr.vmem [resolvable:$true] %s326
          %332 = dma.hbm_to_vmem [thread:$0]  %s4, 1024, %s327, [#allocation9], 64, 64, 4
        $region28: #{attention_pool_2d.1} parent=11 // pred_fallthru
          _
        // Predicated region
        $region29: #{attention_pool_2d.1} parent=11 // pred_check
          %p333 = pneg %p158
        $region30: #{attention_pool_2d.1} parent=11 // pred_check_branch
          %335 = sbr.rel (%p333) target = $region32
        $region31: #{attention_pool_2d.1} parent=11 // pred_region
          %s337 = ssub.s32 16, 16
          %338 = vsyncadd [#allocation12], %s337
          %s340 = sshll.u32 [#allocation11], 4
          %s341 = int_to_ptr.vmem [resolvable:$true] %s340
          %343 = dma.hbm_to_vmem [thread:$0]  %s5, 16, %s341, [#allocation12]
        $region32: #{attention_pool_2d.1} parent=11 // pred_fallthru
          _
        // Predicated region
        $region33: #{attention_pool_2d.1} parent=11 // pred_check
          %p344 = pneg %p179
        $region34: #{attention_pool_2d.1} parent=11 // pred_check_branch
          %346 = sbr.rel (%p344) target = $region36
        $region35: #{attention_pool_2d.1} parent=11 // pred_region
          %s348 = ssub.s32 1024, 1024
          %349 = vsyncadd [#allocation12], %s348
          %s350 = sshll.u32 [#allocation13], 4
          %s351 = int_to_ptr.vmem [resolvable:$true] %s350
          %356 = dma.hbm_to_vmem [thread:$0]  %s6, 1024, %s351, [#allocation12], 64, 64, 4
        $region36: #{attention_pool_2d.1} parent=11 // pred_fallthru
          _
        // Predicated region
        $region37: #{attention_pool_2d.1} parent=11 // pred_check
          %p357 = pneg %p200
        $region38: #{attention_pool_2d.1} parent=11 // pred_check_branch
          %359 = sbr.rel (%p357) target = $region40
        $region39: #{attention_pool_2d.1} parent=11 // pred_region
          %s361 = ssub.s32 16, 16
          %362 = vsyncadd [#allocation15], %s361
          %s364 = sshll.u32 [#allocation14], 4
          %s365 = int_to_ptr.vmem [resolvable:$true] %s364
          %367 = dma.hbm_to_vmem [thread:$0]  %s7, 16, %s365, [#allocation15]
        $region40: #{attention_pool_2d.1} parent=11 // pred_fallthru
          _
        // Predicated region
        $region41: #{attention_pool_2d.1} parent=11 // pred_check
          %p368 = pneg %p221
        $region42: #{attention_pool_2d.1} parent=11 // pred_check_branch
          %370 = sbr.rel (%p368) target = $region44
        $region43: #{attention_pool_2d.1} parent=11 // pred_region
          %s372 = ssub.s32 1024, 1024
          %373 = vsyncadd [#allocation15], %s372
          %s374 = sshll.u32 [#allocation16], 4
          %s375 = int_to_ptr.vmem [resolvable:$true] %s374
          %380 = dma.hbm_to_vmem [thread:$0]  %s8, 1024, %s375, [#allocation15], 64, 64, 4
        $region44: #{attention_pool_2d.1} parent=11 // pred_fallthru
          _
        // Predicated region
        $region45: #{attention_pool_2d.1} parent=11 // pred_check
          %p381 = pneg %p242
        $region46: #{attention_pool_2d.1} parent=11 // pred_check_branch
          %383 = sbr.rel (%p381) target = $region48
        $region47: #{attention_pool_2d.1} parent=11 // pred_region
          %s385 = ssub.s32 16, 16
          %386 = vsyncadd [#allocation18], %s385
          %s388 = sshll.u32 [#allocation17], 4
          %s389 = int_to_ptr.vmem [resolvable:$true] %s388
          %391 = dma.hbm_to_vmem [thread:$0]  %s9, 16, %s389, [#allocation18]
        $region48: #{attention_pool_2d.1} parent=11 // pred_fallthru
          _
      $region12: #{attention_pool_2d.1} parent=5 // pred_fallthru
        _
      %p392 = scmp.lt.s32.totalorder %s27, 2
      // Predicated region
      $region49: #{attention_pool_2d.1} parent=5 // pred_check
        %p393 = pneg %p392
      $region50: #{attention_pool_2d.1} parent=5 // pred_check_branch
        %395 = sbr.rel (%p393) target = $region52
      $region51: #{attention_pool_2d.1} parent=5 // pred_region
        // Predicated region
        $region53: #{attention_pool_2d.1} parent=51 // pred_check
          %p396 = pneg %p47
        $region54: #{attention_pool_2d.1} parent=51 // pred_check_branch
          %398 = sbr.rel (%p396) target = $region56
        $region55: #{attention_pool_2d.1} parent=51 // pred_region
          %s399 = sand.u32 %s37, 1
          %s400 = scalar_lea.sflag [#allocation3], %s399
          %s401 = sand.u32 %s37, 1
          %s402 = smul.addr %s401, 128
          %s403 = scalar_lea.vmem [#allocation2], %s402
          %s405 = ssub.s32 2048, 2048
          %406 = vsyncadd %s400, %s405
          %s407 = smul.addr %s27, 128
          %s408 = scalar_lea.hbm %s0, %s407
          %s409 = sshll.u32 %s403, 4
          %s410 = int_to_ptr.vmem [resolvable:$true] %s409
          %415 = dma.hbm_to_vmem [thread:$0]  %s408, 2048, %s410, %s400, 256, 128, 8
        $region56: #{attention_pool_2d.1} parent=51 // pred_fallthru
          _
      $region52: #{attention_pool_2d.1} parent=5 // pred_fallthru
        _
      %p416 = scmp.le.s32.totalorder 1, %s27
      %p417 = scmp.lt.s32.totalorder %s27, 3
      %p418 = pnand %p416, %p417
      %p419 = pneg %p418
      // Predicated region
      $region57: #{attention_pool_2d.1} parent=5 // pred_check
        _
      $region58: #{attention_pool_2d.1} parent=5 // pred_check_branch
        %421 = sbr.rel (%p418) target = $region60
      $region59: #{attention_pool_2d.1} parent=5 // pred_region
        %s422 = ssub.s32 %s27, 1
        %s423 = sand.u32 %s40, 1
        %s424 = scalar_lea.sflag [#allocation3], %s423
        %s425 = sand.u32 %s40, 1
        %s426 = smul.addr %s425, 128
        %s427 = scalar_lea.vmem [#allocation2], %s426
        // Predicated region
        $region61: #{attention_pool_2d.1} parent=59 // pred_check
          %p428 = pneg %p53
        $region62: #{attention_pool_2d.1} parent=59 // pred_check_branch
          %430 = sbr.rel (%p428) target = $region64
        $region63: #{attention_pool_2d.1} parent=59 // pred_region
          %431 = dma.done %s424, 2048
        $region64: #{attention_pool_2d.1} parent=59 // pred_fallthru
          _
        // Predicated region
        $region65: #{attention_pool_2d.1} parent=59 // pred_check
          %p432 = pneg %p74
        $region66: #{attention_pool_2d.1} parent=59 // pred_check_branch
          %434 = sbr.rel (%p432) target = $region68
        $region67: #{attention_pool_2d.1} parent=59 // pred_region
          %435 = dma.done [#allocation6], 384
        $region68: #{attention_pool_2d.1} parent=59 // pred_fallthru
          _
        // Predicated region
        $region69: #{attention_pool_2d.1} parent=59 // pred_check
          %p436 = pneg %p95
        $region70: #{attention_pool_2d.1} parent=59 // pred_check_branch
          %438 = sbr.rel (%p436) target = $region72
        $region71: #{attention_pool_2d.1} parent=59 // pred_region
          %439 = dma.done [#allocation6], 1024
        $region72: #{attention_pool_2d.1} parent=59 // pred_fallthru
          _
        // Predicated region
        $region73: #{attention_pool_2d.1} parent=59 // pred_check
          %p440 = pneg %p116
        $region74: #{attention_pool_2d.1} parent=59 // pred_check_branch
          %442 = sbr.rel (%p440) target = $region76
        $region75: #{attention_pool_2d.1} parent=59 // pred_region
          %443 = dma.done [#allocation9], 16
        $region76: #{attention_pool_2d.1} parent=59 // pred_fallthru
          _
        // Predicated region
        $region77: #{attention_pool_2d.1} parent=59 // pred_check
          %p444 = pneg %p137
        $region78: #{attention_pool_2d.1} parent=59 // pred_check_branch
          %446 = sbr.rel (%p444) target = $region80
        $region79: #{attention_pool_2d.1} parent=59 // pred_region
          %447 = dma.done [#allocation9], 1024
        $region80: #{attention_pool_2d.1} parent=59 // pred_fallthru
          _
        // Predicated region
        $region81: #{attention_pool_2d.1} parent=59 // pred_check
          %p448 = pneg %p158
        $region82: #{attention_pool_2d.1} parent=59 // pred_check_branch
          %450 = sbr.rel (%p448) target = $region84
        $region83: #{attention_pool_2d.1} parent=59 // pred_region
          %451 = dma.done [#allocation12], 16
        $region84: #{attention_pool_2d.1} parent=59 // pred_fallthru
          _
        // Predicated region
        $region85: #{attention_pool_2d.1} parent=59 // pred_check
          %p452 = pneg %p179
        $region86: #{attention_pool_2d.1} parent=59 // pred_check_branch
          %454 = sbr.rel (%p452) target = $region88
        $region87: #{attention_pool_2d.1} parent=59 // pred_region
          %455 = dma.done [#allocation12], 1024
        $region88: #{attention_pool_2d.1} parent=59 // pred_fallthru
          _
        // Predicated region
        $region89: #{attention_pool_2d.1} parent=59 // pred_check
          %p456 = pneg %p200
        $region90: #{attention_pool_2d.1} parent=59 // pred_check_branch
          %458 = sbr.rel (%p456) target = $region92
        $region91: #{attention_pool_2d.1} parent=59 // pred_region
          %459 = dma.done [#allocation15], 16
        $region92: #{attention_pool_2d.1} parent=59 // pred_fallthru
          _
        // Predicated region
        $region93: #{attention_pool_2d.1} parent=59 // pred_check
          %p460 = pneg %p221
        $region94: #{attention_pool_2d.1} parent=59 // pred_check_branch
          %462 = sbr.rel (%p460) target = $region96
        $region95: #{attention_pool_2d.1} parent=59 // pred_region
          %463 = dma.done [#allocation15], 1024
        $region96: #{attention_pool_2d.1} parent=59 // pred_fallthru
          _
        // Predicated region
        $region97: #{attention_pool_2d.1} parent=59 // pred_check
          %p464 = pneg %p242
        $region98: #{attention_pool_2d.1} parent=59 // pred_check_branch
          %466 = sbr.rel (%p464) target = $region100
        $region99: #{attention_pool_2d.1} parent=59 // pred_region
          %467 = dma.done [#allocation18], 16
        $region100: #{attention_pool_2d.1} parent=59 // pred_fallthru
          _
        %s468 = sand.u32 %s40, 1
        %s469 = scalar_lea.sflag [#allocation3], %s468
        %s470 = sand.u32 %s40, 1
        %s471 = smul.addr %s470, 128
        %s472 = scalar_lea.vmem [#allocation2], %s471
        %p473 = pneg %p53
        %p474 = pneg %p50
        %p475 = pneg %p74
        %p476 = pneg %p71
        %p477 = pneg %p95
        %p478 = pneg %p92
        %p479 = pneg %p116
        %p480 = pneg %p113
        %p481 = pneg %p137
        %p482 = pneg %p134
        %p483 = pneg %p158
        %p484 = pneg %p155
        %p485 = pneg %p179
        %p486 = pneg %p176
        %p487 = pneg %p200
        %p488 = pneg %p197
        %p489 = pneg %p221
        %p490 = pneg %p218
        %p491 = pneg %p242
        %p492 = pneg %p239
        %p493 = pneg %p268
        %p494 = pneg %p265
        %s495 = sand.u32 %s255, 1
        %s496 = scalar_lea.sflag [#allocation4], %s495
        %s497 = sand.u32 %s255, 1
        %s498 = smul.addr %s497, 16
        %s499 = scalar_lea.vmem [#allocation19], %s498
        %v501 = vld [vmem:[%s427] sm:$0xff]
        %v502 = vld [vmem:[%s427 + $0x8] sm:$0xff]
        %v503 = vld [vmem:[%s427 + $0x10] sm:$0xff]
        %v504 = vld [vmem:[%s427 + $0x18] sm:$0xff]
        %v505 = vld [vmem:[%s427 + $0x20] sm:$0xff]
        %v506 = vld [vmem:[%s427 + $0x28] sm:$0xff]
        %v507 = vld [vmem:[%s427 + $0x30] sm:$0xff]
        %v508 = vld [vmem:[%s427 + $0x38] sm:$0xff]
        %v509 = vld [vmem:[%s427 + $0x40] sm:$0xff]
        %v510 = vld [vmem:[%s427 + $0x48] sm:$0xff]
        %v511 = vld [vmem:[%s427 + $0x50] sm:$0xff]
        %v512 = vld [vmem:[%s427 + $0x58] sm:$0xff]
        %v513 = vld [vmem:[%s427 + $0x60] sm:$0xff]
        %v514 = vld [vmem:[%s427 + $0x68] sm:$0xff]
        %v515 = vld [vmem:[%s427 + $0x70] sm:$0xff]
        %v516 = vld [vmem:[%s427 + $0x78] sm:$0xff]
        %v517 = vld [vmem:[#allocation5] sm:$0xff]
        %v518 = vld [vmem:[#allocation5 + $0x8] sm:$0xff]
        %v519 = vld [vmem:[#allocation5 + $0x10] sm:$0x3]
        %v520 = vadd.f32 %v501, %v502
        %v521 = vadd.f32 %v520, %v503
        %v522 = vadd.f32 %v521, %v504
        %v523 = vadd.f32 %v522, %v505
        %v524 = vadd.f32 %v523, %v506
        %v525 = vadd.f32 %v524, %v507
        %v526 = vadd.f32 %v525, %v508
        %v527 = vadd.f32 %v526, %v509
        %v528 = vadd.f32 %v527, %v510
        %v529 = vadd.f32 %v528, %v511
        %v530 = vadd.f32 %v529, %v512
        %v531 = vadd.f32 %v530, %v513
        %v532 = vadd.f32 %v531, %v514
        %v533 = vadd.f32 %v532, %v515
        %v534 = vadd.f32 %v533, %v516
        %v535 = vrcp.pop 16.0
        %v536 = vmul.f32 %v534, %v535
        %v540 = vcombine.high %v517, %v517
        %v542 = vunpack.c.l.s4 1966171168
        %v543 = vunpack.c.0.s8 %v542
        %v544 = vlaneseq
        %v545 = vshrl.u32 %v544, 7
        %v546 = vsub.s32 %v543, %v545
        %v547 = vrot.slane %v517, %v546
        %v549 = vunpack.c.l.s4 1966171168
        %v550 = vunpack.c.0.s8 %v549
        %v551 = vlaneseq
        %v552 = vshrl.u32 %v551, 7
        %v553 = vsub.s32 %v550, %v552
        %v554 = vrot.slane %v540, %v553
        %v555 = vcombine.high %v547, %v547
        %v556 = vcombine.high %v554, %v554
        %v558 = vunpack.c.l.s4 1966171168
        %v559 = vunpack.c.0.s8 %v558
        %v560 = vlaneseq
        %v561 = vshrl.u32 %v560, 7
        %v562 = vsub.s32 %v559, %v561
        %v563 = vrot.slane %v547, %v562
        %v565 = vunpack.c.l.s4 1966171168
        %v566 = vunpack.c.0.s8 %v565
        %v567 = vlaneseq
        %v568 = vshrl.u32 %v567, 7
        %v569 = vsub.s32 %v566, %v568
        %v570 = vrot.slane %v554, %v569
        %v572 = vunpack.c.l.s4 1966171168
        %v573 = vunpack.c.0.s8 %v572
        %v574 = vlaneseq
        %v575 = vshrl.u32 %v574, 7
        %v576 = vsub.s32 %v573, %v575
        %v577 = vrot.slane %v555, %v576
        %v579 = vunpack.c.l.s4 1966171168
        %v580 = vunpack.c.0.s8 %v579
        %v581 = vlaneseq
        %v582 = vshrl.u32 %v581, 7
        %v583 = vsub.s32 %v580, %v582
        %v584 = vrot.slane %v556, %v583
        %v585 = vcombine.high %v563, %v563
        %v586 = vcombine.high %v570, %v570
        %v587 = vcombine.high %v577, %v577
        %v588 = vcombine.high %v584, %v584
        %v589 = vcombine.high %v518, %v518
        %v591 = vunpack.c.l.s4 1966171168
        %v592 = vunpack.c.0.s8 %v591
        %v593 = vlaneseq
        %v594 = vshrl.u32 %v593, 7
        %v595 = vsub.s32 %v592, %v594
        %v596 = vrot.slane %v518, %v595
        %v598 = vunpack.c.l.s4 1966171168
        %v599 = vunpack.c.0.s8 %v598
        %v600 = vlaneseq
        %v601 = vshrl.u32 %v600, 7
        %v602 = vsub.s32 %v599, %v601
        %v603 = vrot.slane %v589, %v602
        %v604 = vcombine.high %v596, %v596
        %v605 = vcombine.high %v603, %v603
        %v607 = vunpack.c.l.s4 1966171168
        %v608 = vunpack.c.0.s8 %v607
        %v609 = vlaneseq
        %v610 = vshrl.u32 %v609, 7
        %v611 = vsub.s32 %v608, %v610
        %v612 = vrot.slane %v596, %v611
        %v614 = vunpack.c.l.s4 1966171168
        %v615 = vunpack.c.0.s8 %v614
        %v616 = vlaneseq
        %v617 = vshrl.u32 %v616, 7
        %v618 = vsub.s32 %v615, %v617
        %v619 = vrot.slane %v603, %v618
        %v621 = vunpack.c.l.s4 1966171168
        %v622 = vunpack.c.0.s8 %v621
        %v623 = vlaneseq
        %v624 = vshrl.u32 %v623, 7
        %v625 = vsub.s32 %v622, %v624
        %v626 = vrot.slane %v604, %v625
        %v628 = vunpack.c.l.s4 1966171168
        %v629 = vunpack.c.0.s8 %v628
        %v630 = vlaneseq
        %v631 = vshrl.u32 %v630, 7
        %v632 = vsub.s32 %v629, %v631
        %v633 = vrot.slane %v605, %v632
        %v634 = vcombine.high %v612, %v612
        %v635 = vcombine.high %v619, %v619
        %v636 = vcombine.high %v626, %v626
        %v637 = vcombine.high %v633, %v633
        %v639 = vunpack.c.l.s4 1966171168
        %v640 = vunpack.c.0.s8 %v639
        %v641 = vlaneseq
        %v642 = vshrl.u32 %v641, 7
        %v643 = vsub.s32 %v640, %v642
        %v644 = vrot.slane %v519, %v643
        %v645 = vcombine.high %v644, %v644
        %v647 = vunpack.c.l.s4 1966171168
        %v648 = vunpack.c.0.s8 %v647
        %v649 = vlaneseq
        %v650 = vshrl.u32 %v649, 7
        %v651 = vsub.s32 %v648, %v650
        %v652 = vrot.slane %v644, %v651
        %v654 = vunpack.c.l.s4 1966171168
        %v655 = vunpack.c.0.s8 %v654
        %v656 = vlaneseq
        %v657 = vshrl.u32 %v656, 7
        %v658 = vsub.s32 %v655, %v657
        %v659 = vrot.slane %v645, %v658
        %v660 = vlaneseq
        %v661 = vshrl.u32 %v660, 7
        %v662 = vsub.s32 0, %v661
        %v663 = vrot.slane %v563, %v662
        %v664 = vlaneseq
        %v665 = vshrl.u32 %v664, 7
        %v666 = vsub.s32 0, %v665
        %v667 = vrot.slane %v577, %v666
        %v668 = vlaneseq
        %v669 = vshrl.u32 %v668, 7
        %v670 = vsub.s32 0, %v669
        %v671 = vrot.slane %v585, %v670
        %v672 = vlaneseq
        %v673 = vshrl.u32 %v672, 7
        %v674 = vsub.s32 0, %v673
        %v675 = vrot.slane %v587, %v674
        %v676 = vlaneseq
        %v677 = vshrl.u32 %v676, 7
        %v678 = vsub.s32 0, %v677
        %v679 = vrot.slane %v570, %v678
        %v680 = vlaneseq
        %v681 = vshrl.u32 %v680, 7
        %v682 = vsub.s32 0, %v681
        %v683 = vrot.slane %v584, %v682
        %v684 = vlaneseq
        %v685 = vshrl.u32 %v684, 7
        %v686 = vsub.s32 0, %v685
        %v687 = vrot.slane %v586, %v686
        %v688 = vlaneseq
        %v689 = vshrl.u32 %v688, 7
        %v690 = vsub.s32 0, %v689
        %v691 = vrot.slane %v588, %v690
        %v692 = vlaneseq
        %v693 = vshrl.u32 %v692, 7
        %v694 = vsub.s32 0, %v693
        %v695 = vrot.slane %v612, %v694
        %v696 = vlaneseq
        %v697 = vshrl.u32 %v696, 7
        %v698 = vsub.s32 0, %v697
        %v699 = vrot.slane %v626, %v698
        %v700 = vlaneseq
        %v701 = vshrl.u32 %v700, 7
        %v702 = vsub.s32 0, %v701
        %v703 = vrot.slane %v634, %v702
        %v704 = vlaneseq
        %v705 = vshrl.u32 %v704, 7
        %v706 = vsub.s32 0, %v705
        %v707 = vrot.slane %v636, %v706
        %v708 = vlaneseq
        %v709 = vshrl.u32 %v708, 7
        %v710 = vsub.s32 0, %v709
        %v711 = vrot.slane %v619, %v710
        %v712 = vlaneseq
        %v713 = vshrl.u32 %v712, 7
        %v714 = vsub.s32 0, %v713
        %v715 = vrot.slane %v633, %v714
        %v716 = vlaneseq
        %v717 = vshrl.u32 %v716, 7
        %v718 = vsub.s32 0, %v717
        %v719 = vrot.slane %v635, %v718
        %v720 = vlaneseq
        %v721 = vshrl.u32 %v720, 7
        %v722 = vsub.s32 0, %v721
        %v723 = vrot.slane %v637, %v722
        %v724 = vlaneseq
        %v725 = vshrl.u32 %v724, 7
        %v726 = vsub.s32 0, %v725
        %v727 = vrot.slane %v652, %v726
        %v728 = vlaneseq
        %v729 = vshrl.u32 %v728, 7
        %v730 = vsub.s32 0, %v729
        %v731 = vrot.slane %v659, %v730
        %v750 = vadd.f32 %v536, %v663
        %v751 = vadd.f32 %v536, %v667
        %v752 = vadd.f32 %v501, %v671
        %v753 = vadd.f32 %v502, %v675
        %v754 = vadd.f32 %v503, %v679
        %v755 = vadd.f32 %v504, %v683
        %v756 = vadd.f32 %v505, %v687
        %v757 = vadd.f32 %v506, %v691
        %v758 = vadd.f32 %v507, %v695
        %v759 = vadd.f32 %v508, %v699
        %v760 = vadd.f32 %v509, %v703
        %v761 = vadd.f32 %v510, %v707
        %v762 = vadd.f32 %v511, %v711
        %v763 = vadd.f32 %v512, %v715
        %v764 = vadd.f32 %v513, %v719
        %v765 = vadd.f32 %v514, %v723
        %v766 = vadd.f32 %v515, %v727
        %v767 = vadd.f32 %v516, %v731
        %v768 = vpack.c.bf16 %v751, %v750
        %v769 = vpack.c.bf16 %v753, %v752
        %v770 = vpack.c.bf16 %v755, %v754
        %v771 = vpack.c.bf16 %v757, %v756
        %v772 = vpack.c.bf16 %v759, %v758
        %v773 = vpack.c.bf16 %v761, %v760
        %v774 = vpack.c.bf16 %v763, %v762
        %v775 = vpack.c.bf16 %v765, %v764
        %v776 = vpack.c.bf16 %v767, %v766
        %v777 = vld [vmem:[#allocation7] sm:$0xf]
        %v778 = vld [vmem:[#allocation7 + $0x4] sm:$0xf]
        %v779 = vld [vmem:[#allocation7 + $0x8] sm:$0xf]
        %v780 = vld [vmem:[#allocation7 + $0xc] sm:$0xf]
        %v781 = vld [vmem:[#allocation7 + $0x10] sm:$0xf]
        %v782 = vld [vmem:[#allocation7 + $0x14] sm:$0xf]
        %v783 = vld [vmem:[#allocation7 + $0x18] sm:$0xf]
        %v784 = vld [vmem:[#allocation7 + $0x1c] sm:$0xf]
        %v785 = vld [vmem:[#allocation7 + $0x20] sm:$0xf]
        %v786 = vld [vmem:[#allocation7 + $0x24] sm:$0xf]
        %v787 = vld [vmem:[#allocation7 + $0x28] sm:$0xf]
        %v788 = vld [vmem:[#allocation7 + $0x2c] sm:$0xf]
        %v789 = vld [vmem:[#allocation7 + $0x30] sm:$0xf]
        %v790 = vld [vmem:[#allocation7 + $0x34] sm:$0xf]
        %v791 = vld [vmem:[#allocation7 + $0x38] sm:$0xf]
        %v792 = vld [vmem:[#allocation7 + $0x3c] sm:$0xf]
        %v793 = vld [vmem:[#allocation8] sm:$0x1]
        %v795 = vlaneseq
        %v796 = vshrl.u32 %v795, 7
        %v797 = vsub.s32 0, %v796
        %v798 = vrot.slane %v793, %v797
        %v816 = vunpack.c.l.b16 %v777
        %v817 = vunpack.c.l.b16 %v778
        %v818 = vunpack.c.l.b16 %v779
        %v819 = vunpack.c.l.b16 %v780
        %v820 = vunpack.c.l.b16 %v781
        %v821 = vunpack.c.l.b16 %v782
        %v822 = vunpack.c.l.b16 %v783
        %v823 = vunpack.c.l.b16 %v784
        %v824 = vunpack.c.l.b16 %v785
        %v825 = vunpack.c.l.b16 %v786
        %v826 = vunpack.c.l.b16 %v787
        %v827 = vunpack.c.l.b16 %v788
        %v828 = vunpack.c.l.b16 %v789
        %v829 = vunpack.c.l.b16 %v790
        %v830 = vunpack.c.l.b16 %v791
        %v831 = vunpack.c.l.b16 %v792
        %v832 = vpack.c.b16 %v817, %v816
        %v833 = vpack.c.b16 %v819, %v818
        %v834 = vpack.c.b16 %v821, %v820
        %v835 = vpack.c.b16 %v823, %v822
        %v836 = vpack.c.b16 %v825, %v824
        %v837 = vpack.c.b16 %v827, %v826
        %v838 = vpack.c.b16 %v829, %v828
        %v839 = vpack.c.b16 %v831, %v830
        %848 = vmatprep.subr.bf16.mxu0 0
        %849 = vmatpush1.bf16.msra.mxu0 %v832
        %850 = vmatprep.subr.bf16.mxu0 0
        %851 = vmatpush1.bf16.msra.mxu0 %v833
        %852 = vmatprep.subr.bf16.mxu0 0
        %853 = vmatpush1.bf16.msra.mxu0 %v834
        %854 = vmatprep.subr.bf16.mxu0 0
        %855 = vmatpush1.bf16.msra.mxu0 %v835
        %856 = vmatprep.subr.bf16.mxu0 0
        %857 = vmatpush1.bf16.msra.mxu0 %v836
        %858 = vmatprep.subr.bf16.mxu0 0
        %859 = vmatpush1.bf16.msra.mxu0 %v837
        %860 = vmatprep.subr.bf16.mxu0 0
        %861 = vmatpush1.bf16.msra.mxu0 %v838
        %862 = vmatprep.subr.bf16.mxu0 0
        %863 = vmatpush1.bf16.msra.mxu0 %v839
        %864 = vmatprep.subr.bf16.mxu0 0
        %865 = vmatpush1.bf16.msra.mxu0 0
        %866 = vmatprep.subr.bf16.mxu0 0
        %867 = vmatpush1.bf16.msra.mxu0 0
        %868 = vmatprep.subr.bf16.mxu0 0
        %869 = vmatpush1.bf16.msra.mxu0 0
        %870 = vmatprep.subr.bf16.mxu0 0
        %871 = vmatpush1.bf16.msra.mxu0 0
        %872 = vmatprep.subr.bf16.mxu0 0
        %873 = vmatpush1.bf16.msra.mxu0 0
        %874 = vmatprep.subr.bf16.mxu0 0
        %875 = vmatpush1.bf16.msra.mxu0 0
        %876 = vmatprep.subr.bf16.mxu0 0
        %877 = vmatpush1.bf16.msra.mxu0 0
        %878 = vmatprep.subr.bf16.mxu0 0
        %879 = vmatpush1.bf16.msra.mxu0 0
        %880 = vmatprep.mubr.bf16.mxu0 0
        %881 = vmatmul.mubr.bf16.gmra.mrb[0].mxu0 %v768
        %v882 = vpop.f32.mrb[0].mxu0
        %v883 = vadd.f32 %v798, %v882
        %v884 = vpop.f32.mrb[0].mxu0
        %v885 = vpop.f32.mrb[0].mxu0
        %v886 = vadd.f32 %v798, %v885
        %v887 = vpop.f32.mrb[0].mxu0
        %888 = vdwg.mxu0
        %v889 = vld [vmem:[#allocation10] sm:$0xf]
        %v890 = vld [vmem:[#allocation10 + $0x4] sm:$0xf]
        %v891 = vld [vmem:[#allocation10 + $0x8] sm:$0xf]
        %v892 = vld [vmem:[#allocation10 + $0xc] sm:$0xf]
        %v893 = vld [vmem:[#allocation10 + $0x10] sm:$0xf]
        %v894 = vld [vmem:[#allocation10 + $0x14] sm:$0xf]
        %v895 = vld [vmem:[#allocation10 + $0x18] sm:$0xf]
        %v896 = vld [vmem:[#allocation10 + $0x1c] sm:$0xf]
        %v897 = vld [vmem:[#allocation10 + $0x20] sm:$0xf]
        %v898 = vld [vmem:[#allocation10 + $0x24] sm:$0xf]
        %v899 = vld [vmem:[#allocation10 + $0x28] sm:$0xf]
        %v900 = vld [vmem:[#allocation10 + $0x2c] sm:$0xf]
        %v901 = vld [vmem:[#allocation10 + $0x30] sm:$0xf]
        %v902 = vld [vmem:[#allocation10 + $0x34] sm:$0xf]
        %v903 = vld [vmem:[#allocation10 + $0x38] sm:$0xf]
        %v904 = vld [vmem:[#allocation10 + $0x3c] sm:$0xf]
        %v905 = vld [vmem:[#allocation11] sm:$0x1]
        %v907 = vlaneseq
        %v908 = vshrl.u32 %v907, 7
        %v909 = vsub.s32 0, %v908
        %v910 = vrot.slane %v905, %v909
        %v928 = vunpack.c.l.b16 %v889
        %v929 = vunpack.c.l.b16 %v890
        %v930 = vunpack.c.l.b16 %v891
        %v931 = vunpack.c.l.b16 %v892
        %v932 = vunpack.c.l.b16 %v893
        %v933 = vunpack.c.l.b16 %v894
        %v934 = vunpack.c.l.b16 %v895
        %v935 = vunpack.c.l.b16 %v896
        %v936 = vunpack.c.l.b16 %v897
        %v937 = vunpack.c.l.b16 %v898
        %v938 = vunpack.c.l.b16 %v899
        %v939 = vunpack.c.l.b16 %v900
        %v940 = vunpack.c.l.b16 %v901
        %v941 = vunpack.c.l.b16 %v902
        %v942 = vunpack.c.l.b16 %v903
        %v943 = vunpack.c.l.b16 %v904
        %v944 = vpack.c.b16 %v929, %v928
        %v945 = vpack.c.b16 %v931, %v930
        %v946 = vpack.c.b16 %v933, %v932
        %v947 = vpack.c.b16 %v935, %v934
        %v948 = vpack.c.b16 %v937, %v936
        %v949 = vpack.c.b16 %v939, %v938
        %v950 = vpack.c.b16 %v941, %v940
        %v951 = vpack.c.b16 %v943, %v942
        %960 = vmatprep.subr.bf16.mxu0 0
        %961 = vmatpush1.bf16.msra.mxu0 %v944
        %962 = vmatprep.subr.bf16.mxu0 0
        %963 = vmatpush1.bf16.msra.mxu0 %v945
        %964 = vmatprep.subr.bf16.mxu0 0
        %965 = vmatpush1.bf16.msra.mxu0 %v946
        %966 = vmatprep.subr.bf16.mxu0 0
        %967 = vmatpush1.bf16.msra.mxu0 %v947
        %968 = vmatprep.subr.bf16.mxu0 0
        %969 = vmatpush1.bf16.msra.mxu0 %v948
        %970 = vmatprep.subr.bf16.mxu0 0
        %971 = vmatpush1.bf16.msra.mxu0 %v949
        %972 = vmatprep.subr.bf16.mxu0 0
        %973 = vmatpush1.bf16.msra.mxu0 %v950
        %974 = vmatprep.subr.bf16.mxu0 0
        %975 = vmatpush1.bf16.msra.mxu0 %v951
        %976 = vmatprep.subr.bf16.mxu0 0
        %977 = vmatpush1.bf16.msra.mxu0 0
        %978 = vmatprep.subr.bf16.mxu0 0
        %979 = vmatpush1.bf16.msra.mxu0 0
        %980 = vmatprep.subr.bf16.mxu0 0
        %981 = vmatpush1.bf16.msra.mxu0 0
        %982 = vmatprep.subr.bf16.mxu0 0
        %983 = vmatpush1.bf16.msra.mxu0 0
        %984 = vmatprep.subr.bf16.mxu0 0
        %985 = vmatpush1.bf16.msra.mxu0 0
        %986 = vmatprep.subr.bf16.mxu0 0
        %987 = vmatpush1.bf16.msra.mxu0 0
        %988 = vmatprep.subr.bf16.mxu0 0
        %989 = vmatpush1.bf16.msra.mxu0 0
        %990 = vmatprep.subr.bf16.mxu0 0
        %991 = vmatpush1.bf16.msra.mxu0 0
        %992 = vmatprep.mubr.bf16.mxu0 0
        %993 = vmatmul.mubr.bf16.gmra.mrb[0].mxu0 %v768
        %v994 = vpop.f32.mrb[0].mxu0
        %v995 = vadd.f32 %v910, %v994
        %v996 = vpop.f32.mrb[0].mxu0
        %v997 = vpop.f32.mrb[0].mxu0
        %v998 = vadd.f32 %v910, %v997
        %v999 = vpop.f32.mrb[0].mxu0
        %1000 = vmatprep.mubr.bf16.mxu0 0
        %1001 = vmatmul.mubr.bf16.gmra.mrb[0].mxu0 %v769
        %v1002 = vpop.f32.mrb[0].mxu0
        %v1003 = vadd.f32 %v910, %v1002
        %v1004 = vpop.f32.mrb[0].mxu0
        %v1005 = vpop.f32.mrb[0].mxu0
        %v1006 = vadd.f32 %v910, %v1005
        %v1007 = vpop.f32.mrb[0].mxu0
        %1008 = vmatprep.mubr.bf16.mxu0 0
        %1009 = vmatmul.mubr.bf16.gmra.mrb[0].mxu0 %v770
        %v1010 = vpop.f32.mrb[0].mxu0
        %v1011 = vadd.f32 %v910, %v1010
        %v1012 = vpop.f32.mrb[0].mxu0
        %v1013 = vpop.f32.mrb[0].mxu0
        %v1014 = vadd.f32 %v910, %v1013
        %v1015 = vpop.f32.mrb[0].mxu0
        %1016 = vmatprep.mubr.bf16.mxu0 0
        %1017 = vmatmul.mubr.bf16.gmra.mrb[0].mxu0 %v771
        %v1018 = vpop.f32.mrb[0].mxu0
        %v1019 = vadd.f32 %v910, %v1018
        %v1020 = vpop.f32.mrb[0].mxu0
        %v1021 = vpop.f32.mrb[0].mxu0
        %v1022 = vadd.f32 %v910, %v1021
        %v1023 = vpop.f32.mrb[0].mxu0
        %1024 = vmatprep.mubr.bf16.mxu0 0
        %1025 = vmatmul.mubr.bf16.gmra.mrb[0].mxu0 %v772
        %v1026 = vpop.f32.mrb[0].mxu0
        %v1027 = vadd.f32 %v910, %v1026
        %v1028 = vpop.f32.mrb[0].mxu0
        %v1029 = vpop.f32.mrb[0].mxu0
        %v1030 = vadd.f32 %v910, %v1029
        %v1031 = vpop.f32.mrb[0].mxu0
        %1032 = vmatprep.mubr.bf16.mxu0 0
        %1033 = vmatmul.mubr.bf16.gmra.mrb[0].mxu0 %v773
        %v1034 = vpop.f32.mrb[0].mxu0
        %v1035 = vadd.f32 %v910, %v1034
        %v1036 = vpop.f32.mrb[0].mxu0
        %v1037 = vpop.f32.mrb[0].mxu0
        %v1038 = vadd.f32 %v910, %v1037
        %v1039 = vpop.f32.mrb[0].mxu0
        %1040 = vmatprep.mubr.bf16.mxu0 0
        %1041 = vmatmul.mubr.bf16.gmra.mrb[0].mxu0 %v774
        %v1042 = vpop.f32.mrb[0].mxu0
        %v1043 = vadd.f32 %v910, %v1042
        %v1044 = vpop.f32.mrb[0].mxu0
        %v1045 = vpop.f32.mrb[0].mxu0
        %v1046 = vadd.f32 %v910, %v1045
        %v1047 = vpop.f32.mrb[0].mxu0
        %1048 = vmatprep.mubr.bf16.mxu0 0
        %1049 = vmatmul.mubr.bf16.gmra.mrb[0].mxu0 %v775
        %v1050 = vpop.f32.mrb[0].mxu0
        %v1051 = vadd.f32 %v910, %v1050
        %v1052 = vpop.f32.mrb[0].mxu0
        %v1053 = vpop.f32.mrb[0].mxu0
        %v1054 = vadd.f32 %v910, %v1053
        %v1055 = vpop.f32.mrb[0].mxu0
        %1056 = vmatprep.mubr.bf16.mxu0 0
        %1057 = vmatmul.mubr.bf16.gmra.mrb[0].mxu0 %v776
        %v1058 = vpop.f32.mrb[0].mxu0
        %v1059 = vadd.f32 %v910, %v1058
        %v1060 = vpop.f32.mrb[0].mxu0
        %v1061 = vpop.f32.mrb[0].mxu0
        %v1062 = vadd.f32 %v910, %v1061
        %v1063 = vpop.f32.mrb[0].mxu0
        %1064 = vdwg.mxu0
        %v1065 = vld [vmem:[#allocation13] sm:$0xf]
        %v1066 = vld [vmem:[#allocation13 + $0x4] sm:$0xf]
        %v1067 = vld [vmem:[#allocation13 + $0x8] sm:$0xf]
        %v1068 = vld [vmem:[#allocation13 + $0xc] sm:$0xf]
        %v1069 = vld [vmem:[#allocation13 + $0x10] sm:$0xf]
        %v1070 = vld [vmem:[#allocation13 + $0x14] sm:$0xf]
        %v1071 = vld [vmem:[#allocation13 + $0x18] sm:$0xf]
        %v1072 = vld [vmem:[#allocation13 + $0x1c] sm:$0xf]
        %v1073 = vld [vmem:[#allocation13 + $0x20] sm:$0xf]
        %v1074 = vld [vmem:[#allocation13 + $0x24] sm:$0xf]
        %v1075 = vld [vmem:[#allocation13 + $0x28] sm:$0xf]
        %v1076 = vld [vmem:[#allocation13 + $0x2c] sm:$0xf]
        %v1077 = vld [vmem:[#allocation13 + $0x30] sm:$0xf]
        %v1078 = vld [vmem:[#allocation13 + $0x34] sm:$0xf]
        %v1079 = vld [vmem:[#allocation13 + $0x38] sm:$0xf]
        %v1080 = vld [vmem:[#allocation13 + $0x3c] sm:$0xf]
        %v1081 = vld [vmem:[#allocation14] sm:$0x1]
        %v1083 = vlaneseq
        %v1084 = vshrl.u32 %v1083, 7
        %v1085 = vsub.s32 0, %v1084
        %v1086 = vrot.slane %v1081, %v1085
        %v1104 = vunpack.c.l.b16 %v1065
        %v1105 = vunpack.c.l.b16 %v1066
        %v1106 = vunpack.c.l.b16 %v1067
        %v1107 = vunpack.c.l.b16 %v1068
        %v1108 = vunpack.c.l.b16 %v1069
        %v1109 = vunpack.c.l.b16 %v1070
        %v1110 = vunpack.c.l.b16 %v1071
        %v1111 = vunpack.c.l.b16 %v1072
        %v1112 = vunpack.c.l.b16 %v1073
        %v1113 = vunpack.c.l.b16 %v1074
        %v1114 = vunpack.c.l.b16 %v1075
        %v1115 = vunpack.c.l.b16 %v1076
        %v1116 = vunpack.c.l.b16 %v1077
        %v1117 = vunpack.c.l.b16 %v1078
        %v1118 = vunpack.c.l.b16 %v1079
        %v1119 = vunpack.c.l.b16 %v1080
        %v1120 = vpack.c.b16 %v1105, %v1104
        %v1121 = vpack.c.b16 %v1107, %v1106
        %v1122 = vpack.c.b16 %v1109, %v1108
        %v1123 = vpack.c.b16 %v1111, %v1110
        %v1124 = vpack.c.b16 %v1113, %v1112
        %v1125 = vpack.c.b16 %v1115, %v1114
        %v1126 = vpack.c.b16 %v1117, %v1116
        %v1127 = vpack.c.b16 %v1119, %v1118
        %1136 = vmatprep.subr.bf16.mxu0 0
        %1137 = vmatpush1.bf16.msra.mxu0 %v1120
        %1138 = vmatprep.subr.bf16.mxu0 0
        %1139 = vmatpush1.bf16.msra.mxu0 %v1121
        %1140 = vmatprep.subr.bf16.mxu0 0
        %1141 = vmatpush1.bf16.msra.mxu0 %v1122
        %1142 = vmatprep.subr.bf16.mxu0 0
        %1143 = vmatpush1.bf16.msra.mxu0 %v1123
        %1144 = vmatprep.subr.bf16.mxu0 0
        %1145 = vmatpush1.bf16.msra.mxu0 %v1124
        %1146 = vmatprep.subr.bf16.mxu0 0
        %1147 = vmatpush1.bf16.msra.mxu0 %v1125
        %1148 = vmatprep.subr.bf16.mxu0 0
        %1149 = vmatpush1.bf16.msra.mxu0 %v1126
        %1150 = vmatprep.subr.bf16.mxu0 0
        %1151 = vmatpush1.bf16.msra.mxu0 %v1127
        %1152 = vmatprep.subr.bf16.mxu0 0
        %1153 = vmatpush1.bf16.msra.mxu0 0
        %1154 = vmatprep.subr.bf16.mxu0 0
        %1155 = vmatpush1.bf16.msra.mxu0 0
        %1156 = vmatprep.subr.bf16.mxu0 0
        %1157 = vmatpush1.bf16.msra.mxu0 0
        %1158 = vmatprep.subr.bf16.mxu0 0
        %1159 = vmatpush1.bf16.msra.mxu0 0
        %1160 = vmatprep.subr.bf16.mxu0 0
        %1161 = vmatpush1.bf16.msra.mxu0 0
        %1162 = vmatprep.subr.bf16.mxu0 0
        %1163 = vmatpush1.bf16.msra.mxu0 0
        %1164 = vmatprep.subr.bf16.mxu0 0
        %1165 = vmatpush1.bf16.msra.mxu0 0
        %1166 = vmatprep.subr.bf16.mxu0 0
        %1167 = vmatpush1.bf16.msra.mxu0 0
        %1168 = vmatprep.mubr.bf16.mxu0 0
        %1169 = vmatmul.mubr.bf16.gmra.mrb[0].mxu0 %v768
        %v1170 = vpop.f32.mrb[0].mxu0
        %v1171 = vadd.f32 %v1086, %v1170
        %v1172 = vpop.f32.mrb[0].mxu0
        %v1173 = vpop.f32.mrb[0].mxu0
        %v1174 = vadd.f32 %v1086, %v1173
        %v1175 = vpop.f32.mrb[0].mxu0
        %1176 = vmatprep.mubr.bf16.mxu0 0
        %1177 = vmatmul.mubr.bf16.gmra.mrb[0].mxu0 %v769
        %v1178 = vpop.f32.mrb[0].mxu0
        %v1179 = vadd.f32 %v1086, %v1178
        %v1180 = vpop.f32.mrb[0].mxu0
        %v1181 = vpop.f32.mrb[0].mxu0
        %v1182 = vadd.f32 %v1086, %v1181
        %v1183 = vpop.f32.mrb[0].mxu0
        %1184 = vmatprep.mubr.bf16.mxu0 0
        %1185 = vmatmul.mubr.bf16.gmra.mrb[0].mxu0 %v770
        %v1186 = vpop.f32.mrb[0].mxu0
        %v1187 = vadd.f32 %v1086, %v1186
        %v1188 = vpop.f32.mrb[0].mxu0
        %v1189 = vpop.f32.mrb[0].mxu0
        %v1190 = vadd.f32 %v1086, %v1189
        %v1191 = vpop.f32.mrb[0].mxu0
        %1192 = vmatprep.mubr.bf16.mxu0 0
        %1193 = vmatmul.mubr.bf16.gmra.mrb[0].mxu0 %v771
        %v1194 = vpop.f32.mrb[0].mxu0
        %v1195 = vadd.f32 %v1086, %v1194
        %v1196 = vpop.f32.mrb[0].mxu0
        %v1197 = vpop.f32.mrb[0].mxu0
        %v1198 = vadd.f32 %v1086, %v1197
        %v1199 = vpop.f32.mrb[0].mxu0
        %1200 = vmatprep.mubr.bf16.mxu0 0
        %1201 = vmatmul.mubr.bf16.gmra.mrb[0].mxu0 %v772
        %v1202 = vpop.f32.mrb[0].mxu0
        %v1203 = vadd.f32 %v1086, %v1202
        %v1204 = vpop.f32.mrb[0].mxu0
        %v1205 = vpop.f32.mrb[0].mxu0
        %v1206 = vadd.f32 %v1086, %v1205
        %v1207 = vpop.f32.mrb[0].mxu0
        %1208 = vmatprep.mubr.bf16.mxu0 0
        %1209 = vmatmul.mubr.bf16.gmra.mrb[0].mxu0 %v773
        %v1210 = vpop.f32.mrb[0].mxu0
        %v1211 = vadd.f32 %v1086, %v1210
        %v1212 = vpop.f32.mrb[0].mxu0
        %v1213 = vpop.f32.mrb[0].mxu0
        %v1214 = vadd.f32 %v1086, %v1213
        %v1215 = vpop.f32.mrb[0].mxu0
        %1216 = vmatprep.mubr.bf16.mxu0 0
        %1217 = vmatmul.mubr.bf16.gmra.mrb[0].mxu0 %v774
        %v1218 = vpop.f32.mrb[0].mxu0
        %v1219 = vadd.f32 %v1086, %v1218
        %v1220 = vpop.f32.mrb[0].mxu0
        %v1221 = vpop.f32.mrb[0].mxu0
        %v1222 = vadd.f32 %v1086, %v1221
        %v1223 = vpop.f32.mrb[0].mxu0
        %1224 = vmatprep.mubr.bf16.mxu0 0
        %1225 = vmatmul.mubr.bf16.gmra.mrb[0].mxu0 %v775
        %v1226 = vpop.f32.mrb[0].mxu0
        %v1227 = vadd.f32 %v1086, %v1226
        %v1228 = vpop.f32.mrb[0].mxu0
        %v1229 = vpop.f32.mrb[0].mxu0
        %v1230 = vadd.f32 %v1086, %v1229
        %v1231 = vpop.f32.mrb[0].mxu0
        %1232 = vmatprep.mubr.bf16.mxu0 0
        %1233 = vmatmul.mubr.bf16.gmra.mrb[0].mxu0 %v776
        %v1234 = vpop.f32.mrb[0].mxu0
        %v1235 = vadd.f32 %v1086, %v1234
        %v1236 = vpop.f32.mrb[0].mxu0
        %v1237 = vpop.f32.mrb[0].mxu0
        %v1238 = vadd.f32 %v1086, %v1237
        %v1239 = vpop.f32.mrb[0].mxu0
        %1240 = vdwg.mxu0
        %v1241 = vlaneseq
        %v1242 = vshrl.u32 %v1241, 7
        %v1243 = vadd.s32 %v1242, 8
        %v1244 = vadd.s32 %v1242, 16
        %v1245 = vadd.s32 %v1242, 24
        %v1246 = vadd.s32 %v1242, 32
        %v1247 = vadd.s32 %v1242, 40
        %v1248 = vadd.s32 %v1242, 48
        %v1249 = vadd.s32 %v1242, 56
        %v1250 = vadd.s32 %v1242, 64
        %v1251 = vadd.s32 %v1242, 72
        %v1252 = vadd.s32 %v1242, 80
        %v1253 = vadd.s32 %v1242, 88
        %v1254 = vadd.s32 %v1242, 96
        %v1255 = vadd.s32 %v1242, 104
        %v1256 = vadd.s32 %v1242, 112
        %v1257 = vadd.s32 %v1242, 120
        %v1258 = vlaneseq
        %v1259 = vand.u32 %v1258, 127
        %v1260 = vmul.u32 %v1259, 32
        %vm1261 = vcmp.ge.s32.totalorder %v1242, %v1260
        %vm1262 = vcmp.ge.s32.totalorder %v1243, %v1260
        %vm1263 = vcmp.ge.s32.totalorder %v1244, %v1260
        %vm1264 = vcmp.ge.s32.totalorder %v1245, %v1260
        %vm1265 = vcmp.ge.s32.totalorder %v1246, %v1260
        %vm1266 = vcmp.ge.s32.totalorder %v1247, %v1260
        %vm1267 = vcmp.ge.s32.totalorder %v1248, %v1260
        %vm1268 = vcmp.ge.s32.totalorder %v1249, %v1260
        %vm1269 = vcmp.ge.s32.totalorder %v1250, %v1260
        %vm1270 = vcmp.ge.s32.totalorder %v1251, %v1260
        %vm1271 = vcmp.ge.s32.totalorder %v1252, %v1260
        %vm1272 = vcmp.ge.s32.totalorder %v1253, %v1260
        %vm1273 = vcmp.ge.s32.totalorder %v1254, %v1260
        %vm1274 = vcmp.ge.s32.totalorder %v1255, %v1260
        %vm1275 = vcmp.ge.s32.totalorder %v1256, %v1260
        %vm1276 = vcmp.ge.s32.totalorder %v1257, %v1260
        %v1277 = vadd.s32 %v1260, 32
        %vm1278 = vcmp.lt.s32.totalorder %v1242, %v1277
        %vm1279 = vcmp.lt.s32.totalorder %v1243, %v1277
        %vm1280 = vcmp.lt.s32.totalorder %v1244, %v1277
        %vm1281 = vcmp.lt.s32.totalorder %v1245, %v1277
        %vm1282 = vcmp.lt.s32.totalorder %v1246, %v1277
        %vm1283 = vcmp.lt.s32.totalorder %v1247, %v1277
        %vm1284 = vcmp.lt.s32.totalorder %v1248, %v1277
        %vm1285 = vcmp.lt.s32.totalorder %v1249, %v1277
        %vm1286 = vcmp.lt.s32.totalorder %v1250, %v1277
        %vm1287 = vcmp.lt.s32.totalorder %v1251, %v1277
        %vm1288 = vcmp.lt.s32.totalorder %v1252, %v1277
        %vm1289 = vcmp.lt.s32.totalorder %v1253, %v1277
        %vm1290 = vcmp.lt.s32.totalorder %v1254, %v1277
        %vm1291 = vcmp.lt.s32.totalorder %v1255, %v1277
        %vm1292 = vcmp.lt.s32.totalorder %v1256, %v1277
        %vm1293 = vcmp.lt.s32.totalorder %v1257, %v1277
        %vm1294 = vmand %vm1261, %vm1278
        %vm1295 = vmand %vm1262, %vm1279
        %vm1296 = vmand %vm1263, %vm1280
        %vm1297 = vmand %vm1264, %vm1281
        %vm1298 = vmand %vm1265, %vm1282
        %vm1299 = vmand %vm1266, %vm1283
        %vm1300 = vmand %vm1267, %vm1284
        %vm1301 = vmand %vm1268, %vm1285
        %vm1302 = vmand %vm1269, %vm1286
        %vm1303 = vmand %vm1270, %vm1287
        %vm1304 = vmand %vm1271, %vm1288
        %vm1305 = vmand %vm1272, %vm1289
        %vm1306 = vmand %vm1273, %vm1290
        %vm1307 = vmand %vm1274, %vm1291
        %vm1308 = vmand %vm1275, %vm1292
        %vm1309 = vmand %vm1276, %vm1293
        %v1310 = vsel %vm1294, 1, 0
        %v1311 = vsel %vm1295, 1, 0
        %v1312 = vsel %vm1296, 1, 0
        %v1313 = vsel %vm1297, 1, 0
        %v1314 = vsel %vm1298, 1, 0
        %v1315 = vsel %vm1299, 1, 0
        %v1316 = vsel %vm1300, 1, 0
        %v1317 = vsel %vm1301, 1, 0
        %v1318 = vsel %vm1302, 1, 0
        %v1319 = vsel %vm1303, 1, 0
        %v1320 = vsel %vm1304, 1, 0
        %v1321 = vsel %vm1305, 1, 0
        %v1322 = vsel %vm1306, 1, 0
        %v1323 = vsel %vm1307, 1, 0
        %v1324 = vsel %vm1308, 1, 0
        %v1325 = vsel %vm1309, 1, 0
        %v1326 = vcvt.s32.f32 %v1310
        %v1327 = vcvt.s32.f32 %v1311
        %v1328 = vcvt.s32.f32 %v1312
        %v1329 = vcvt.s32.f32 %v1313
        %v1330 = vcvt.s32.f32 %v1314
        %v1331 = vcvt.s32.f32 %v1315
        %v1332 = vcvt.s32.f32 %v1316
        %v1333 = vcvt.s32.f32 %v1317
        %v1334 = vcvt.s32.f32 %v1318
        %v1335 = vcvt.s32.f32 %v1319
        %v1336 = vcvt.s32.f32 %v1320
        %v1337 = vcvt.s32.f32 %v1321
        %v1338 = vcvt.s32.f32 %v1322
        %v1339 = vcvt.s32.f32 %v1323
        %v1340 = vcvt.s32.f32 %v1324
        %v1341 = vcvt.s32.f32 %v1325
        %v1342 = vmul.u32 %v1242, 32
        %vm1343 = vcmp.ge.s32.totalorder %v1259, %v1342
        %v1344 = vadd.s32 %v1342, 32
        %vm1345 = vcmp.lt.s32.totalorder %v1259, %v1344
        %vm1346 = vmand %vm1343, %vm1345
        %v1347 = vsel %vm1346, 1, 0
        %v1348 = vcvt.s32.f32 %v1347
        %v1349 = vmul.f32 %v883, %v995
        %v1350 = vmul.f32 %v883, %v998
        %v1351 = vmul.f32 %v883, %v1003
        %v1352 = vmul.f32 %v883, %v1006
        %v1353 = vmul.f32 %v883, %v1011
        %v1354 = vmul.f32 %v883, %v1014
        %v1355 = vmul.f32 %v883, %v1019
        %v1356 = vmul.f32 %v883, %v1022
        %v1357 = vmul.f32 %v883, %v1027
        %v1358 = vmul.f32 %v883, %v1030
        %v1359 = vmul.f32 %v883, %v1035
        %v1360 = vmul.f32 %v883, %v1038
        %v1361 = vmul.f32 %v883, %v1043
        %v1362 = vmul.f32 %v883, %v1046
        %v1363 = vmul.f32 %v883, %v1051
        %v1364 = vmul.f32 %v883, %v1054
        %v1365 = vmul.f32 %v883, %v1059
        %v1366 = vmul.f32 %v883, %v1062
        %v1367 = vmul.f32 %v886, %v995
        %v1368 = vmul.f32 %v886, %v998
        %v1369 = vmul.f32 %v886, %v1003
        %v1370 = vmul.f32 %v886, %v1006
        %v1371 = vmul.f32 %v886, %v1011
        %v1372 = vmul.f32 %v886, %v1014
        %v1373 = vmul.f32 %v886, %v1019
        %v1374 = vmul.f32 %v886, %v1022
        %v1375 = vmul.f32 %v886, %v1027
        %v1376 = vmul.f32 %v886, %v1030
        %v1377 = vmul.f32 %v886, %v1035
        %v1378 = vmul.f32 %v886, %v1038
        %v1379 = vmul.f32 %v886, %v1043
        %v1380 = vmul.f32 %v886, %v1046
        %v1381 = vmul.f32 %v886, %v1051
        %v1382 = vmul.f32 %v886, %v1054
        %v1383 = vmul.f32 %v886, %v1059
        %v1384 = vmul.f32 %v886, %v1062
        %1385 = vmatprep.subr.mxu0 0.0
        %1386 = vmatpush1.msra.mxu0 %v1326
        %1387 = vmatprep.subr.mxu0 0.0
        %1388 = vmatpush1.msra.mxu0 %v1327
        %1389 = vmatprep.subr.mxu0 0.0
        %1390 = vmatpush1.msra.mxu0 %v1328
        %1391 = vmatprep.subr.mxu0 0.0
        %1392 = vmatpush1.msra.mxu0 %v1329
        %1393 = vmatprep.subr.mxu0 0.0
        %1394 = vmatpush1.msra.mxu0 %v1330
        %1395 = vmatprep.subr.mxu0 0.0
        %1396 = vmatpush1.msra.mxu0 %v1331
        %1397 = vmatprep.subr.mxu0 0.0
        %1398 = vmatpush1.msra.mxu0 %v1332
        %1399 = vmatprep.subr.mxu0 0.0
        %1400 = vmatpush1.msra.mxu0 %v1333
        %1401 = vmatprep.subr.mxu0 0.0
        %1402 = vmatpush1.msra.mxu0 %v1334
        %1403 = vmatprep.subr.mxu0 0.0
        %1404 = vmatpush1.msra.mxu0 %v1335
        %1405 = vmatprep.subr.mxu0 0.0
        %1406 = vmatpush1.msra.mxu0 %v1336
        %1407 = vmatprep.subr.mxu0 0.0
        %1408 = vmatpush1.msra.mxu0 %v1337
        %1409 = vmatprep.subr.mxu0 0.0
        %1410 = vmatpush1.msra.mxu0 %v1338
        %1411 = vmatprep.subr.mxu0 0.0
        %1412 = vmatpush1.msra.mxu0 %v1339
        %1413 = vmatprep.subr.mxu0 0.0
        %1414 = vmatpush1.msra.mxu0 %v1340
        %1415 = vmatprep.subr.mxu0 0.0
        %1416 = vmatpush1.msra.mxu0 %v1341
        %1417 = vmatprep.subr.mxu0 0.0
        %1418 = vmatpush1.msra.mxu0 0.0
        %1419 = vmatprep.subr.mxu0 0.0
        %1420 = vmatpush1.msra.mxu0 0.0
        %1421 = vmatprep.subr.mxu0 0.0
        %1422 = vmatpush1.msra.mxu0 0.0
        %1423 = vmatprep.subr.mxu0 0.0
        %1424 = vmatpush1.msra.mxu0 0.0
        %1425 = vmatprep.subr.mxu0 0.0
        %1426 = vmatpush1.msra.mxu0 0.0
        %1427 = vmatprep.subr.mxu0 0.0
        %1428 = vmatpush1.msra.mxu0 0.0
        %1429 = vmatprep.subr.mxu0 0.0
        %1430 = vmatpush1.msra.mxu0 0.0
        %1431 = vmatprep.subr.mxu0 0.0
        %1432 = vmatpush1.msra.mxu0 0.0
        %1433 = vmatprep.subr.mxu0 0.0
        %1434 = vmatpush1.msra.mxu0 0.0
        %1435 = vmatprep.subr.mxu0 0.0
        %1436 = vmatpush1.msra.mxu0 0.0
        %1437 = vmatprep.subr.mxu0 0.0
        %1438 = vmatpush1.msra.mxu0 0.0
        %1439 = vmatprep.subr.mxu0 0.0
        %1440 = vmatpush1.msra.mxu0 0.0
        %1441 = vmatprep.subr.mxu0 0.0
        %1442 = vmatpush1.msra.mxu0 0.0
        %1443 = vmatprep.subr.mxu0 0.0
        %1444 = vmatpush1.msra.mxu0 0.0
        %1445 = vmatprep.subr.mxu0 0.0
        %1446 = vmatpush1.msra.mxu0 0.0
        %1447 = vmatprep.subr.mxu0 0.0
        %1448 = vmatpush1.msra.mxu0 0.0
        %1449 = vmatprep.mubr.f32.mxu0 0.0
        %1450 = vmatmul.mubr.f32.gmra.mrb[0].mxu0 %v1349
        %v1451 = vpop.f32.mrb[0].mxu0
        %v1452 = vadd.f32 0.0, %v1451
        %v1453 = vpop.f32.mrb[0].mxu0
        %1454 = vmatprep.mubr.f32.mxu0 0.0
        %1455 = vmatmul.mubr.f32.gmra.mrb[0].mxu0 %v1350
        %v1456 = vpop.f32.mrb[0].mxu0
        %v1457 = vadd.f32 0.0, %v1456
        %v1458 = vpop.f32.mrb[0].mxu0
        %1459 = vmatprep.mubr.f32.mxu0 0.0
        %1460 = vmatmul.mubr.f32.gmra.mrb[0].mxu0 %v1351
        %v1461 = vpop.f32.mrb[0].mxu0
        %v1462 = vadd.f32 0.0, %v1461
        %v1463 = vpop.f32.mrb[0].mxu0
        %1464 = vmatprep.mubr.f32.mxu0 0.0
        %1465 = vmatmul.mubr.f32.gmra.mrb[0].mxu0 %v1352
        %v1466 = vpop.f32.mrb[0].mxu0
        %v1467 = vadd.f32 0.0, %v1466
        %v1468 = vpop.f32.mrb[0].mxu0
        %1469 = vmatprep.mubr.f32.mxu0 0.0
        %1470 = vmatmul.mubr.f32.gmra.mrb[0].mxu0 %v1353
        %v1471 = vpop.f32.mrb[0].mxu0
        %v1472 = vadd.f32 0.0, %v1471
        %v1473 = vpop.f32.mrb[0].mxu0
        %1474 = vmatprep.mubr.f32.mxu0 0.0
        %1475 = vmatmul.mubr.f32.gmra.mrb[0].mxu0 %v1354
        %v1476 = vpop.f32.mrb[0].mxu0
        %v1477 = vadd.f32 0.0, %v1476
        %v1478 = vpop.f32.mrb[0].mxu0
        %1479 = vmatprep.mubr.f32.mxu0 0.0
        %1480 = vmatmul.mubr.f32.gmra.mrb[0].mxu0 %v1355
        %v1481 = vpop.f32.mrb[0].mxu0
        %v1482 = vadd.f32 0.0, %v1481
        %v1483 = vpop.f32.mrb[0].mxu0
        %1484 = vmatprep.mubr.f32.mxu0 0.0
        %1485 = vmatmul.mubr.f32.gmra.mrb[0].mxu0 %v1356
        %v1486 = vpop.f32.mrb[0].mxu0
        %v1487 = vadd.f32 0.0, %v1486
        %v1488 = vpop.f32.mrb[0].mxu0
        %1489 = vmatprep.mubr.f32.mxu0 0.0
        %1490 = vmatmul.mubr.f32.gmra.mrb[0].mxu0 %v1357
        %v1491 = vpop.f32.mrb[0].mxu0
        %v1492 = vadd.f32 0.0, %v1491
        %v1493 = vpop.f32.mrb[0].mxu0
        %1494 = vmatprep.mubr.f32.mxu0 0.0
        %1495 = vmatmul.mubr.f32.gmra.mrb[0].mxu0 %v1358
        %v1496 = vpop.f32.mrb[0].mxu0
        %v1497 = vadd.f32 0.0, %v1496
        %v1498 = vpop.f32.mrb[0].mxu0
        %1499 = vmatprep.mubr.f32.mxu0 0.0
        %1500 = vmatmul.mubr.f32.gmra.mrb[0].mxu0 %v1359
        %v1501 = vpop.f32.mrb[0].mxu0
        %v1502 = vadd.f32 0.0, %v1501
        %v1503 = vpop.f32.mrb[0].mxu0
        %1504 = vmatprep.mubr.f32.mxu0 0.0
        %1505 = vmatmul.mubr.f32.gmra.mrb[0].mxu0 %v1360
        %v1506 = vpop.f32.mrb[0].mxu0
        %v1507 = vadd.f32 0.0, %v1506
        %v1508 = vpop.f32.mrb[0].mxu0
        %1509 = vmatprep.mubr.f32.mxu0 0.0
        %1510 = vmatmul.mubr.f32.gmra.mrb[0].mxu0 %v1361
        %v1511 = vpop.f32.mrb[0].mxu0
        %v1512 = vadd.f32 0.0, %v1511
        %v1513 = vpop.f32.mrb[0].mxu0
        %1514 = vmatprep.mubr.f32.mxu0 0.0
        %1515 = vmatmul.mubr.f32.gmra.mrb[0].mxu0 %v1362
        %v1516 = vpop.f32.mrb[0].mxu0
        %v1517 = vadd.f32 0.0, %v1516
        %v1518 = vpop.f32.mrb[0].mxu0
        %1519 = vmatprep.mubr.f32.mxu0 0.0
        %1520 = vmatmul.mubr.f32.gmra.mrb[0].mxu0 %v1363
        %v1521 = vpop.f32.mrb[0].mxu0
        %v1522 = vadd.f32 0.0, %v1521
        %v1523 = vpop.f32.mrb[0].mxu0
        %1524 = vmatprep.mubr.f32.mxu0 0.0
        %1525 = vmatmul.mubr.f32.gmra.mrb[0].mxu0 %v1364
        %v1526 = vpop.f32.mrb[0].mxu0
        %v1527 = vadd.f32 0.0, %v1526
        %v1528 = vpop.f32.mrb[0].mxu0
        %1529 = vmatprep.mubr.f32.mxu0 0.0
        %1530 = vmatmul.mubr.f32.gmra.mrb[0].mxu0 %v1365
        %v1531 = vpop.f32.mrb[0].mxu0
        %v1532 = vadd.f32 0.0, %v1531
        %v1533 = vpop.f32.mrb[0].mxu0
        %1534 = vmatprep.mubr.f32.mxu0 0.0
        %1535 = vmatmul.mubr.f32.gmra.mrb[0].mxu0 %v1366
        %v1536 = vpop.f32.mrb[0].mxu0
        %v1537 = vadd.f32 0.0, %v1536
        %v1538 = vpop.f32.mrb[0].mxu0
        %1539 = vmatprep.mubr.f32.mxu0 0.0
        %1540 = vmatmul.mubr.f32.gmra.mrb[0].mxu0 %v1367
        %v1541 = vpop.f32.mrb[0].mxu0
        %v1542 = vadd.f32 0.0, %v1541
        %v1543 = vpop.f32.mrb[0].mxu0
        %1544 = vmatprep.mubr.f32.mxu0 0.0
        %1545 = vmatmul.mubr.f32.gmra.mrb[0].mxu0 %v1368
        %v1546 = vpop.f32.mrb[0].mxu0
        %v1547 = vadd.f32 0.0, %v1546
        %v1548 = vpop.f32.mrb[0].mxu0
        %1549 = vmatprep.mubr.f32.mxu0 0.0
        %1550 = vmatmul.mubr.f32.gmra.mrb[0].mxu0 %v1369
        %v1551 = vpop.f32.mrb[0].mxu0
        %v1552 = vadd.f32 0.0, %v1551
        %v1553 = vpop.f32.mrb[0].mxu0
        %1554 = vmatprep.mubr.f32.mxu0 0.0
        %1555 = vmatmul.mubr.f32.gmra.mrb[0].mxu0 %v1370
        %v1556 = vpop.f32.mrb[0].mxu0
        %v1557 = vadd.f32 0.0, %v1556
        %v1558 = vpop.f32.mrb[0].mxu0
        %1559 = vmatprep.mubr.f32.mxu0 0.0
        %1560 = vmatmul.mubr.f32.gmra.mrb[0].mxu0 %v1371
        %v1561 = vpop.f32.mrb[0].mxu0
        %v1562 = vadd.f32 0.0, %v1561
        %v1563 = vpop.f32.mrb[0].mxu0
        %1564 = vmatprep.mubr.f32.mxu0 0.0
        %1565 = vmatmul.mubr.f32.gmra.mrb[0].mxu0 %v1372
        %v1566 = vpop.f32.mrb[0].mxu0
        %v1567 = vadd.f32 0.0, %v1566
        %v1568 = vpop.f32.mrb[0].mxu0
        %1569 = vmatprep.mubr.f32.mxu0 0.0
        %1570 = vmatmul.mubr.f32.gmra.mrb[0].mxu0 %v1373
        %v1571 = vpop.f32.mrb[0].mxu0
        %v1572 = vadd.f32 0.0, %v1571
        %v1573 = vpop.f32.mrb[0].mxu0
        %1574 = vmatprep.mubr.f32.mxu0 0.0
        %1575 = vmatmul.mubr.f32.gmra.mrb[0].mxu0 %v1374
        %v1576 = vpop.f32.mrb[0].mxu0
        %v1577 = vadd.f32 0.0, %v1576
        %v1578 = vpop.f32.mrb[0].mxu0
        %1579 = vmatprep.mubr.f32.mxu0 0.0
        %1580 = vmatmul.mubr.f32.gmra.mrb[0].mxu0 %v1375
        %v1581 = vpop.f32.mrb[0].mxu0
        %v1582 = vadd.f32 0.0, %v1581
        %v1583 = vpop.f32.mrb[0].mxu0
        %1584 = vmatprep.mubr.f32.mxu0 0.0
        %1585 = vmatmul.mubr.f32.gmra.mrb[0].mxu0 %v1376
        %v1586 = vpop.f32.mrb[0].mxu0
        %v1587 = vadd.f32 0.0, %v1586
        %v1588 = vpop.f32.mrb[0].mxu0
        %1589 = vmatprep.mubr.f32.mxu0 0.0
        %1590 = vmatmul.mubr.f32.gmra.mrb[0].mxu0 %v1377
        %v1591 = vpop.f32.mrb[0].mxu0
        %v1592 = vadd.f32 0.0, %v1591
        %v1593 = vpop.f32.mrb[0].mxu0
        %1594 = vmatprep.mubr.f32.mxu0 0.0
        %1595 = vmatmul.mubr.f32.gmra.mrb[0].mxu0 %v1378
        %v1596 = vpop.f32.mrb[0].mxu0
        %v1597 = vadd.f32 0.0, %v1596
        %v1598 = vpop.f32.mrb[0].mxu0
        %1599 = vmatprep.mubr.f32.mxu0 0.0
        %1600 = vmatmul.mubr.f32.gmra.mrb[0].mxu0 %v1379
        %v1601 = vpop.f32.mrb[0].mxu0
        %v1602 = vadd.f32 0.0, %v1601
        %v1603 = vpop.f32.mrb[0].mxu0
        %1604 = vmatprep.mubr.f32.mxu0 0.0
        %1605 = vmatmul.mubr.f32.gmra.mrb[0].mxu0 %v1380
        %v1606 = vpop.f32.mrb[0].mxu0
        %v1607 = vadd.f32 0.0, %v1606
        %v1608 = vpop.f32.mrb[0].mxu0
        %1609 = vmatprep.mubr.f32.mxu0 0.0
        %1610 = vmatmul.mubr.f32.gmra.mrb[0].mxu0 %v1381
        %v1611 = vpop.f32.mrb[0].mxu0
        %v1612 = vadd.f32 0.0, %v1611
        %v1613 = vpop.f32.mrb[0].mxu0
        %1614 = vmatprep.mubr.f32.mxu0 0.0
        %1615 = vmatmul.mubr.f32.gmra.mrb[0].mxu0 %v1382
        %v1616 = vpop.f32.mrb[0].mxu0
        %v1617 = vadd.f32 0.0, %v1616
        %v1618 = vpop.f32.mrb[0].mxu0
        %1619 = vmatprep.mubr.f32.mxu0 0.0
        %1620 = vmatmul.mubr.f32.gmra.mrb[0].mxu0 %v1383
        %v1621 = vpop.f32.mrb[0].mxu0
        %v1622 = vadd.f32 0.0, %v1621
        %v1623 = vpop.f32.mrb[0].mxu0
        %1624 = vmatprep.mubr.f32.mxu0 0.0
        %1625 = vmatmul.mubr.f32.gmra.mrb[0].mxu0 %v1384
        %v1626 = vpop.f32.mrb[0].mxu0
        %v1627 = vadd.f32 0.0, %v1626
        %v1628 = vpop.f32.mrb[0].mxu0
        %1629 = vdwg.mxu0
        %vm1630 = vcmask 31744
        %v1631 = vsel %vm1630, %v1452, -inf
        %v1632 = vsel %vm1630, %v1457, -inf
        %v1633 = vsel %vm1630, %v1462, -inf
        %v1634 = vmax.f32 %v1631, %v1633
        %v1635 = vsel %vm1630, %v1467, -inf
        %v1636 = vmax.f32 %v1632, %v1635
        %v1637 = vsel %vm1630, %v1472, -inf
        %v1638 = vmax.f32 %v1634, %v1637
        %v1639 = vsel %vm1630, %v1477, -inf
        %v1640 = vmax.f32 %v1636, %v1639
        %v1641 = vsel %vm1630, %v1482, -inf
        %v1642 = vmax.f32 %v1638, %v1641
        %v1643 = vsel %vm1630, %v1487, -inf
        %v1644 = vmax.f32 %v1640, %v1643
        %v1645 = vsel %vm1630, %v1492, -inf
        %v1646 = vmax.f32 %v1642, %v1645
        %v1647 = vsel %vm1630, %v1497, -inf
        %v1648 = vmax.f32 %v1644, %v1647
        %v1649 = vsel %vm1630, %v1502, -inf
        %v1650 = vmax.f32 %v1646, %v1649
        %v1651 = vsel %vm1630, %v1507, -inf
        %v1652 = vmax.f32 %v1648, %v1651
        %v1653 = vsel %vm1630, %v1512, -inf
        %v1654 = vmax.f32 %v1650, %v1653
        %v1655 = vsel %vm1630, %v1517, -inf
        %v1656 = vmax.f32 %v1652, %v1655
        %v1657 = vsel %vm1630, %v1522, -inf
        %v1658 = vmax.f32 %v1654, %v1657
        %v1659 = vsel %vm1630, %v1527, -inf
        %v1660 = vmax.f32 %v1656, %v1659
        %v1661 = vsel %vm1630, %v1532, -inf
        %v1662 = vmax.f32 %v1658, %v1661
        %v1663 = vsel %vm1630, %v1537, -inf
        %v1664 = vmax.f32 %v1660, %v1663
        %v1665 = vmax.f32 %v1662, %v1664
        %v1666 = vsel %vm1630, %v1542, -inf
        %v1667 = vsel %vm1630, %v1547, -inf
        %v1668 = vsel %vm1630, %v1552, -inf
        %v1669 = vmax.f32 %v1666, %v1668
        %v1670 = vsel %vm1630, %v1557, -inf
        %v1671 = vmax.f32 %v1667, %v1670
        %v1672 = vsel %vm1630, %v1562, -inf
        %v1673 = vmax.f32 %v1669, %v1672
        %v1674 = vsel %vm1630, %v1567, -inf
        %v1675 = vmax.f32 %v1671, %v1674
        %v1676 = vsel %vm1630, %v1572, -inf
        %v1677 = vmax.f32 %v1673, %v1676
        %v1678 = vsel %vm1630, %v1577, -inf
        %v1679 = vmax.f32 %v1675, %v1678
        %v1680 = vsel %vm1630, %v1582, -inf
        %v1681 = vmax.f32 %v1677, %v1680
        %v1682 = vsel %vm1630, %v1587, -inf
        %v1683 = vmax.f32 %v1679, %v1682
        %v1684 = vsel %vm1630, %v1592, -inf
        %v1685 = vmax.f32 %v1681, %v1684
        %v1686 = vsel %vm1630, %v1597, -inf
        %v1687 = vmax.f32 %v1683, %v1686
        %v1688 = vsel %vm1630, %v1602, -inf
        %v1689 = vmax.f32 %v1685, %v1688
        %v1690 = vsel %vm1630, %v1607, -inf
        %v1691 = vmax.f32 %v1687, %v1690
        %v1692 = vsel %vm1630, %v1612, -inf
        %v1693 = vmax.f32 %v1689, %v1692
        %v1694 = vsel %vm1630, %v1617, -inf
        %v1695 = vmax.f32 %v1691, %v1694
        %v1696 = vsel %vm1630, %v1622, -inf
        %v1697 = vmax.f32 %v1693, %v1696
        %v1698 = vsel %vm1630, %v1627, -inf
        %v1699 = vmax.f32 %v1695, %v1698
        %v1700 = vmax.f32 %v1697, %v1699
        %v1701 = vsub.f32 %v1452, %v1665
        %v1702 = vsub.f32 %v1457, %v1665
        %v1703 = vsub.f32 %v1462, %v1665
        %v1704 = vsub.f32 %v1467, %v1665
        %v1705 = vsub.f32 %v1472, %v1665
        %v1706 = vsub.f32 %v1477, %v1665
        %v1707 = vsub.f32 %v1482, %v1665
        %v1708 = vsub.f32 %v1487, %v1665
        %v1709 = vsub.f32 %v1492, %v1665
        %v1710 = vsub.f32 %v1497, %v1665
        %v1711 = vsub.f32 %v1502, %v1665
        %v1712 = vsub.f32 %v1507, %v1665
        %v1713 = vsub.f32 %v1512, %v1665
        %v1714 = vsub.f32 %v1517, %v1665
        %v1715 = vsub.f32 %v1522, %v1665
        %v1716 = vsub.f32 %v1527, %v1665
        %v1717 = vsub.f32 %v1532, %v1665
        %v1718 = vsub.f32 %v1537, %v1665
        %v1719 = vsub.f32 %v1542, %v1700
        %v1720 = vsub.f32 %v1547, %v1700
        %v1721 = vsub.f32 %v1552, %v1700
        %v1722 = vsub.f32 %v1557, %v1700
        %v1723 = vsub.f32 %v1562, %v1700
        %v1724 = vsub.f32 %v1567, %v1700
        %v1725 = vsub.f32 %v1572, %v1700
        %v1726 = vsub.f32 %v1577, %v1700
        %v1727 = vsub.f32 %v1582, %v1700
        %v1728 = vsub.f32 %v1587, %v1700
        %v1729 = vsub.f32 %v1592, %v1700
        %v1730 = vsub.f32 %v1597, %v1700
        %v1731 = vsub.f32 %v1602, %v1700
        %v1732 = vsub.f32 %v1607, %v1700
        %v1733 = vsub.f32 %v1612, %v1700
        %v1734 = vsub.f32 %v1617, %v1700
        %v1735 = vsub.f32 %v1622, %v1700
        %v1736 = vsub.f32 %v1627, %v1700
        %v1737 = vmul.f32 %v1701, 1.442695
        %v1738 = vpow.pop %v1737
        %v1739 = vmul.f32 %v1702, 1.442695
        %v1740 = vpow.pop %v1739
        %v1741 = vmul.f32 %v1703, 1.442695
        %v1742 = vpow.pop %v1741
        %v1743 = vmul.f32 %v1704, 1.442695
        %v1744 = vpow.pop %v1743
        %v1745 = vmul.f32 %v1705, 1.442695
        %v1746 = vpow.pop %v1745
        %v1747 = vmul.f32 %v1706, 1.442695
        %v1748 = vpow.pop %v1747
        %v1749 = vmul.f32 %v1707, 1.442695
        %v1750 = vpow.pop %v1749
        %v1751 = vmul.f32 %v1708, 1.442695
        %v1752 = vpow.pop %v1751
        %v1753 = vmul.f32 %v1709, 1.442695
        %v1754 = vpow.pop %v1753
        %v1755 = vmul.f32 %v1710, 1.442695
        %v1756 = vpow.pop %v1755
        %v1757 = vmul.f32 %v1711, 1.442695
        %v1758 = vpow.pop %v1757
        %v1759 = vmul.f32 %v1712, 1.442695
        %v1760 = vpow.pop %v1759
        %v1761 = vmul.f32 %v1713, 1.442695
        %v1762 = vpow.pop %v1761
        %v1763 = vmul.f32 %v1714, 1.442695
        %v1764 = vpow.pop %v1763
        %v1765 = vmul.f32 %v1715, 1.442695
        %v1766 = vpow.pop %v1765
        %v1767 = vmul.f32 %v1716, 1.442695
        %v1768 = vpow.pop %v1767
        %v1769 = vmul.f32 %v1717, 1.442695
        %v1770 = vpow.pop %v1769
        %v1771 = vmul.f32 %v1718, 1.442695
        %v1772 = vpow.pop %v1771
        %v1773 = vmul.f32 %v1719, 1.442695
        %v1774 = vpow.pop %v1773
        %v1775 = vmul.f32 %v1720, 1.442695
        %v1776 = vpow.pop %v1775
        %v1777 = vmul.f32 %v1721, 1.442695
        %v1778 = vpow.pop %v1777
        %v1779 = vmul.f32 %v1722, 1.442695
        %v1780 = vpow.pop %v1779
        %v1781 = vmul.f32 %v1723, 1.442695
        %v1782 = vpow.pop %v1781
        %v1783 = vmul.f32 %v1724, 1.442695
        %v1784 = vpow.pop %v1783
        %v1785 = vmul.f32 %v1725, 1.442695
        %v1786 = vpow.pop %v1785
        %v1787 = vmul.f32 %v1726, 1.442695
        %v1788 = vpow.pop %v1787
        %v1789 = vmul.f32 %v1727, 1.442695
        %v1790 = vpow.pop %v1789
        %v1791 = vmul.f32 %v1728, 1.442695
        %v1792 = vpow.pop %v1791
        %v1793 = vmul.f32 %v1729, 1.442695
        %v1794 = vpow.pop %v1793
        %v1795 = vmul.f32 %v1730, 1.442695
        %v1796 = vpow.pop %v1795
        %v1797 = vmul.f32 %v1731, 1.442695
        %v1798 = vpow.pop %v1797
        %v1799 = vmul.f32 %v1732, 1.442695
        %v1800 = vpow.pop %v1799
        %v1801 = vmul.f32 %v1733, 1.442695
        %v1802 = vpow.pop %v1801
        %v1803 = vmul.f32 %v1734, 1.442695
        %v1804 = vpow.pop %v1803
        %v1805 = vmul.f32 %v1735, 1.442695
        %v1806 = vpow.pop %v1805
        %v1807 = vmul.f32 %v1736, 1.442695
        %v1808 = vpow.pop %v1807
        %v1809 = vsel %vm1630, %v1738, 0.0
        %v1810 = vsel %vm1630, %v1740, 0.0
        %v1811 = vadd.f32 %v1809, %v1810
        %v1812 = vsel %vm1630, %v1742, 0.0
        %v1813 = vadd.f32 %v1811, %v1812
        %v1814 = vsel %vm1630, %v1744, 0.0
        %v1815 = vadd.f32 %v1813, %v1814
        %v1816 = vsel %vm1630, %v1746, 0.0
        %v1817 = vadd.f32 %v1815, %v1816
        %v1818 = vsel %vm1630, %v1748, 0.0
        %v1819 = vadd.f32 %v1817, %v1818
        %v1820 = vsel %vm1630, %v1750, 0.0
        %v1821 = vadd.f32 %v1819, %v1820
        %v1822 = vsel %vm1630, %v1752, 0.0
        %v1823 = vadd.f32 %v1821, %v1822
        %v1824 = vsel %vm1630, %v1754, 0.0
        %v1825 = vadd.f32 %v1823, %v1824
        %v1826 = vsel %vm1630, %v1756, 0.0
        %v1827 = vadd.f32 %v1825, %v1826
        %v1828 = vsel %vm1630, %v1758, 0.0
        %v1829 = vadd.f32 %v1827, %v1828
        %v1830 = vsel %vm1630, %v1760, 0.0
        %v1831 = vadd.f32 %v1829, %v1830
        %v1832 = vsel %vm1630, %v1762, 0.0
        %v1833 = vadd.f32 %v1831, %v1832
        %v1834 = vsel %vm1630, %v1764, 0.0
        %v1835 = vadd.f32 %v1833, %v1834
        %v1836 = vsel %vm1630, %v1766, 0.0
        %v1837 = vadd.f32 %v1835, %v1836
        %v1838 = vsel %vm1630, %v1768, 0.0
        %v1839 = vadd.f32 %v1837, %v1838
        %v1840 = vsel %vm1630, %v1770, 0.0
        %v1841 = vadd.f32 %v1839, %v1840
        %v1842 = vsel %vm1630, %v1772, 0.0
        %v1843 = vadd.f32 %v1841, %v1842
        %v1844 = vsel %vm1630, %v1774, 0.0
        %v1845 = vsel %vm1630, %v1776, 0.0
        %v1846 = vadd.f32 %v1844, %v1845
        %v1847 = vsel %vm1630, %v1778, 0.0
        %v1848 = vadd.f32 %v1846, %v1847
        %v1849 = vsel %vm1630, %v1780, 0.0
        %v1850 = vadd.f32 %v1848, %v1849
        %v1851 = vsel %vm1630, %v1782, 0.0
        %v1852 = vadd.f32 %v1850, %v1851
        %v1853 = vsel %vm1630, %v1784, 0.0
        %v1854 = vadd.f32 %v1852, %v1853
        %v1855 = vsel %vm1630, %v1786, 0.0
        %v1856 = vadd.f32 %v1854, %v1855
        %v1857 = vsel %vm1630, %v1788, 0.0
        %v1858 = vadd.f32 %v1856, %v1857
        %v1859 = vsel %vm1630, %v1790, 0.0
        %v1860 = vadd.f32 %v1858, %v1859
        %v1861 = vsel %vm1630, %v1792, 0.0
        %v1862 = vadd.f32 %v1860, %v1861
        %v1863 = vsel %vm1630, %v1794, 0.0
        %v1864 = vadd.f32 %v1862, %v1863
        %v1865 = vsel %vm1630, %v1796, 0.0
        %v1866 = vadd.f32 %v1864, %v1865
        %v1867 = vsel %vm1630, %v1798, 0.0
        %v1868 = vadd.f32 %v1866, %v1867
        %v1869 = vsel %vm1630, %v1800, 0.0
        %v1870 = vadd.f32 %v1868, %v1869
        %v1871 = vsel %vm1630, %v1802, 0.0
        %v1872 = vadd.f32 %v1870, %v1871
        %v1873 = vsel %vm1630, %v1804, 0.0
        %v1874 = vadd.f32 %v1872, %v1873
        %v1875 = vsel %vm1630, %v1806, 0.0
        %v1876 = vadd.f32 %v1874, %v1875
        %v1877 = vsel %vm1630, %v1808, 0.0
        %v1878 = vadd.f32 %v1876, %v1877
        %v1879 = vrcp.pop %v1843
        %v1880 = vrcp.pop %v1878
        %v1881 = vmul.f32 %v1738, %v1879
        %v1882 = vmul.f32 %v1740, %v1879
        %v1883 = vmul.f32 %v1742, %v1879
        %v1884 = vmul.f32 %v1744, %v1879
        %v1885 = vmul.f32 %v1746, %v1879
        %v1886 = vmul.f32 %v1748, %v1879
        %v1887 = vmul.f32 %v1750, %v1879
        %v1888 = vmul.f32 %v1752, %v1879
        %v1889 = vmul.f32 %v1754, %v1879
        %v1890 = vmul.f32 %v1756, %v1879
        %v1891 = vmul.f32 %v1758, %v1879
        %v1892 = vmul.f32 %v1760, %v1879
        %v1893 = vmul.f32 %v1762, %v1879
        %v1894 = vmul.f32 %v1764, %v1879
        %v1895 = vmul.f32 %v1766, %v1879
        %v1896 = vmul.f32 %v1768, %v1879
        %v1897 = vmul.f32 %v1770, %v1879
        %v1898 = vmul.f32 %v1772, %v1879
        %v1899 = vmul.f32 %v1774, %v1880
        %v1900 = vmul.f32 %v1776, %v1880
        %v1901 = vmul.f32 %v1778, %v1880
        %v1902 = vmul.f32 %v1780, %v1880
        %v1903 = vmul.f32 %v1782, %v1880
        %v1904 = vmul.f32 %v1784, %v1880
        %v1905 = vmul.f32 %v1786, %v1880
        %v1906 = vmul.f32 %v1788, %v1880
        %v1907 = vmul.f32 %v1790, %v1880
        %v1908 = vmul.f32 %v1792, %v1880
        %v1909 = vmul.f32 %v1794, %v1880
        %v1910 = vmul.f32 %v1796, %v1880
        %v1911 = vmul.f32 %v1798, %v1880
        %v1912 = vmul.f32 %v1800, %v1880
        %v1913 = vmul.f32 %v1802, %v1880
        %v1914 = vmul.f32 %v1804, %v1880
        %v1915 = vmul.f32 %v1806, %v1880
        %v1916 = vmul.f32 %v1808, %v1880
        %v1918 = vsel %vm1630, %v1881, 0
        %v1921 = vsel %vm1630, %v1882, 0
        %v1924 = vsel %vm1630, %v1883, 0
        %v1927 = vsel %vm1630, %v1884, 0
        %v1930 = vsel %vm1630, %v1885, 0
        %v1933 = vsel %vm1630, %v1886, 0
        %v1936 = vsel %vm1630, %v1887, 0
        %v1939 = vsel %vm1630, %v1888, 0
        %v1942 = vsel %vm1630, %v1889, 0
        %v1945 = vsel %vm1630, %v1890, 0
        %v1948 = vsel %vm1630, %v1891, 0
        %v1951 = vsel %vm1630, %v1892, 0
        %v1954 = vsel %vm1630, %v1893, 0
        %v1957 = vsel %vm1630, %v1894, 0
        %v1960 = vsel %vm1630, %v1895, 0
        %v1963 = vsel %vm1630, %v1896, 0
        %v1966 = vsel %vm1630, %v1897, 0
        %v1969 = vsel %vm1630, %v1898, 0
        %v1972 = vsel %vm1630, %v1899, 0
        %v1975 = vsel %vm1630, %v1900, 0
        %v1978 = vsel %vm1630, %v1901, 0
        %v1981 = vsel %vm1630, %v1902, 0
        %v1984 = vsel %vm1630, %v1903, 0
        %v1987 = vsel %vm1630, %v1904, 0
        %v1990 = vsel %vm1630, %v1905, 0
        %v1993 = vsel %vm1630, %v1906, 0
        %v1996 = vsel %vm1630, %v1907, 0
        %v1999 = vsel %vm1630, %v1908, 0
        %v2002 = vsel %vm1630, %v1909, 0
        %v2005 = vsel %vm1630, %v1910, 0
        %v2008 = vsel %vm1630, %v1911, 0
        %v2011 = vsel %vm1630, %v1912, 0
        %v2014 = vsel %vm1630, %v1913, 0
        %v2017 = vsel %vm1630, %v1914, 0
        %v2020 = vsel %vm1630, %v1915, 0
        %v2023 = vsel %vm1630, %v1916, 0
        %vm2025 = vcmask 1043456
        %v2027 = vsel %vm2025, %v1348, 0
        %2029 = vmatprep.subr.mxu0 0.0
        %2030 = vmatpush1.msra.mxu0 %v2027
        %2031 = vmatprep.subr.mxu0 0.0
        %2032 = vmatpush1.msra.mxu0 0.0
        %2033 = vmatprep.subr.mxu0 0.0
        %2034 = vmatpush1.msra.mxu0 0.0
        %2035 = vmatprep.subr.mxu0 0.0
        %2036 = vmatpush1.msra.mxu0 0.0
        %2037 = vmatprep.subr.mxu0 0.0
        %2038 = vmatpush1.msra.mxu0 0.0
        %2039 = vmatprep.subr.mxu0 0.0
        %2040 = vmatpush1.msra.mxu0 0.0
        %2041 = vmatprep.subr.mxu0 0.0
        %2042 = vmatpush1.msra.mxu0 0.0
        %2043 = vmatprep.subr.mxu0 0.0
        %2044 = vmatpush1.msra.mxu0 0.0
        %2045 = vmatprep.subr.mxu0 0.0
        %2046 = vmatpush1.msra.mxu0 0.0
        %2047 = vmatprep.subr.mxu0 0.0
        %2048 = vmatpush1.msra.mxu0 0.0
        %2049 = vmatprep.subr.mxu0 0.0
        %2050 = vmatpush1.msra.mxu0 0.0
        %2051 = vmatprep.subr.mxu0 0.0
        %2052 = vmatpush1.msra.mxu0 0.0
        %2053 = vmatprep.subr.mxu0 0.0
        %2054 = vmatpush1.msra.mxu0 0.0
        %2055 = vmatprep.subr.mxu0 0.0
        %2056 = vmatpush1.msra.mxu0 0.0
        %2057 = vmatprep.subr.mxu0 0.0
        %2058 = vmatpush1.msra.mxu0 0.0
        %2059 = vmatprep.subr.mxu0 0.0
        %2060 = vmatpush1.msra.mxu0 0.0
        %2061 = vmatprep.subr.mxu0 0.0
        %2062 = vmatpush1.msra.mxu0 0.0
        %2063 = vmatprep.subr.mxu0 0.0
        %2064 = vmatpush1.msra.mxu0 0.0
        %2065 = vmatprep.subr.mxu0 0.0
        %2066 = vmatpush1.msra.mxu0 0.0
        %2067 = vmatprep.subr.mxu0 0.0
        %2068 = vmatpush1.msra.mxu0 0.0
        %2069 = vmatprep.subr.mxu0 0.0
        %2070 = vmatpush1.msra.mxu0 0.0
        %2071 = vmatprep.subr.mxu0 0.0
        %2072 = vmatpush1.msra.mxu0 0.0
        %2073 = vmatprep.subr.mxu0 0.0
        %2074 = vmatpush1.msra.mxu0 0.0
        %2075 = vmatprep.subr.mxu0 0.0
        %2076 = vmatpush1.msra.mxu0 0.0
        %2077 = vmatprep.subr.mxu0 0.0
        %2078 = vmatpush1.msra.mxu0 0.0
        %2079 = vmatprep.subr.mxu0 0.0
        %2080 = vmatpush1.msra.mxu0 0.0
        %2081 = vmatprep.subr.mxu0 0.0
        %2082 = vmatpush1.msra.mxu0 0.0
        %2083 = vmatprep.subr.mxu0 0.0
        %2084 = vmatpush1.msra.mxu0 0.0
        %2085 = vmatprep.subr.mxu0 0.0
        %2086 = vmatpush1.msra.mxu0 0.0
        %2087 = vmatprep.subr.mxu0 0.0
        %2088 = vmatpush1.msra.mxu0 0.0
        %2089 = vmatprep.subr.mxu0 0.0
        %2090 = vmatpush1.msra.mxu0 0.0
        %2091 = vmatprep.subr.mxu0 0.0
        %2092 = vmatpush1.msra.mxu0 0.0
        %2093 = vmatprep.mubr.f32.mxu0 0.0
        %2094 = vmatmul.mubr.f32.gmra.mrb[0].mxu0 %v1918
        %v2095 = vpop.f32.mrb[0].mxu0
        %v2096 = vadd.f32 0.0, %v2095
        %v2097 = vpop.f32.mrb[0].mxu0
        %2098 = vmatprep.mubr.f32.mxu0 0.0
        %2099 = vmatmul.mubr.f32.gmra.mrb[0].mxu0 %v1921
        %v2100 = vpop.f32.mrb[0].mxu0
        %v2101 = vadd.f32 0.0, %v2100
        %v2102 = vpop.f32.mrb[0].mxu0
        %2103 = vmatprep.mubr.f32.mxu0 0.0
        %2104 = vmatmul.mubr.f32.gmra.mrb[0].mxu0 %v1924
        %v2105 = vpop.f32.mrb[0].mxu0
        %v2106 = vadd.f32 0.0, %v2105
        %v2107 = vpop.f32.mrb[0].mxu0
        %2108 = vmatprep.mubr.f32.mxu0 0.0
        %2109 = vmatmul.mubr.f32.gmra.mrb[0].mxu0 %v1927
        %v2110 = vpop.f32.mrb[0].mxu0
        %v2111 = vadd.f32 0.0, %v2110
        %v2112 = vpop.f32.mrb[0].mxu0
        %2113 = vmatprep.mubr.f32.mxu0 0.0
        %2114 = vmatmul.mubr.f32.gmra.mrb[0].mxu0 %v1930
        %v2115 = vpop.f32.mrb[0].mxu0
        %v2116 = vadd.f32 0.0, %v2115
        %v2117 = vpop.f32.mrb[0].mxu0
        %2118 = vmatprep.mubr.f32.mxu0 0.0
        %2119 = vmatmul.mubr.f32.gmra.mrb[0].mxu0 %v1933
        %v2120 = vpop.f32.mrb[0].mxu0
        %v2121 = vadd.f32 0.0, %v2120
        %v2122 = vpop.f32.mrb[0].mxu0
        %2123 = vmatprep.mubr.f32.mxu0 0.0
        %2124 = vmatmul.mubr.f32.gmra.mrb[0].mxu0 %v1936
        %v2125 = vpop.f32.mrb[0].mxu0
        %v2126 = vadd.f32 0.0, %v2125
        %v2127 = vpop.f32.mrb[0].mxu0
        %2128 = vmatprep.mubr.f32.mxu0 0.0
        %2129 = vmatmul.mubr.f32.gmra.mrb[0].mxu0 %v1939
        %v2130 = vpop.f32.mrb[0].mxu0
        %v2131 = vadd.f32 0.0, %v2130
        %v2132 = vpop.f32.mrb[0].mxu0
        %2133 = vmatprep.mubr.f32.mxu0 0.0
        %2134 = vmatmul.mubr.f32.gmra.mrb[0].mxu0 %v1942
        %v2135 = vpop.f32.mrb[0].mxu0
        %v2136 = vadd.f32 0.0, %v2135
        %v2137 = vpop.f32.mrb[0].mxu0
        %2138 = vmatprep.mubr.f32.mxu0 0.0
        %2139 = vmatmul.mubr.f32.gmra.mrb[0].mxu0 %v1945
        %v2140 = vpop.f32.mrb[0].mxu0
        %v2141 = vadd.f32 0.0, %v2140
        %v2142 = vpop.f32.mrb[0].mxu0
        %2143 = vmatprep.mubr.f32.mxu0 0.0
        %2144 = vmatmul.mubr.f32.gmra.mrb[0].mxu0 %v1948
        %v2145 = vpop.f32.mrb[0].mxu0
        %v2146 = vadd.f32 0.0, %v2145
        %v2147 = vpop.f32.mrb[0].mxu0
        %2148 = vmatprep.mubr.f32.mxu0 0.0
        %2149 = vmatmul.mubr.f32.gmra.mrb[0].mxu0 %v1951
        %v2150 = vpop.f32.mrb[0].mxu0
        %v2151 = vadd.f32 0.0, %v2150
        %v2152 = vpop.f32.mrb[0].mxu0
        %2153 = vmatprep.mubr.f32.mxu0 0.0
        %2154 = vmatmul.mubr.f32.gmra.mrb[0].mxu0 %v1954
        %v2155 = vpop.f32.mrb[0].mxu0
        %v2156 = vadd.f32 0.0, %v2155
        %v2157 = vpop.f32.mrb[0].mxu0
        %2158 = vmatprep.mubr.f32.mxu0 0.0
        %2159 = vmatmul.mubr.f32.gmra.mrb[0].mxu0 %v1957
        %v2160 = vpop.f32.mrb[0].mxu0
        %v2161 = vadd.f32 0.0, %v2160
        %v2162 = vpop.f32.mrb[0].mxu0
        %2163 = vmatprep.mubr.f32.mxu0 0.0
        %2164 = vmatmul.mubr.f32.gmra.mrb[0].mxu0 %v1960
        %v2165 = vpop.f32.mrb[0].mxu0
        %v2166 = vadd.f32 0.0, %v2165
        %v2167 = vpop.f32.mrb[0].mxu0
        %2168 = vmatprep.mubr.f32.mxu0 0.0
        %2169 = vmatmul.mubr.f32.gmra.mrb[0].mxu0 %v1963
        %v2170 = vpop.f32.mrb[0].mxu0
        %v2171 = vadd.f32 0.0, %v2170
        %v2172 = vpop.f32.mrb[0].mxu0
        %2173 = vmatprep.mubr.f32.mxu0 0.0
        %2174 = vmatmul.mubr.f32.gmra.mrb[0].mxu0 %v1966
        %v2175 = vpop.f32.mrb[0].mxu0
        %v2176 = vadd.f32 0.0, %v2175
        %v2177 = vpop.f32.mrb[0].mxu0
        %2178 = vmatprep.mubr.f32.mxu0 0.0
        %2179 = vmatmul.mubr.f32.gmra.mrb[0].mxu0 %v1969
        %v2180 = vpop.f32.mrb[0].mxu0
        %v2181 = vadd.f32 0.0, %v2180
        %v2182 = vpop.f32.mrb[0].mxu0
        %2183 = vmatprep.mubr.f32.mxu0 0.0
        %2184 = vmatmul.mubr.f32.gmra.mrb[0].mxu0 %v1972
        %v2185 = vpop.f32.mrb[0].mxu0
        %v2186 = vadd.f32 0.0, %v2185
        %v2187 = vpop.f32.mrb[0].mxu0
        %2188 = vmatprep.mubr.f32.mxu0 0.0
        %2189 = vmatmul.mubr.f32.gmra.mrb[0].mxu0 %v1975
        %v2190 = vpop.f32.mrb[0].mxu0
        %v2191 = vadd.f32 0.0, %v2190
        %v2192 = vpop.f32.mrb[0].mxu0
        %2193 = vmatprep.mubr.f32.mxu0 0.0
        %2194 = vmatmul.mubr.f32.gmra.mrb[0].mxu0 %v1978
        %v2195 = vpop.f32.mrb[0].mxu0
        %v2196 = vadd.f32 0.0, %v2195
        %v2197 = vpop.f32.mrb[0].mxu0
        %2198 = vmatprep.mubr.f32.mxu0 0.0
        %2199 = vmatmul.mubr.f32.gmra.mrb[0].mxu0 %v1981
        %v2200 = vpop.f32.mrb[0].mxu0
        %v2201 = vadd.f32 0.0, %v2200
        %v2202 = vpop.f32.mrb[0].mxu0
        %2203 = vmatprep.mubr.f32.mxu0 0.0
        %2204 = vmatmul.mubr.f32.gmra.mrb[0].mxu0 %v1984
        %v2205 = vpop.f32.mrb[0].mxu0
        %v2206 = vadd.f32 0.0, %v2205
        %v2207 = vpop.f32.mrb[0].mxu0
        %2208 = vmatprep.mubr.f32.mxu0 0.0
        %2209 = vmatmul.mubr.f32.gmra.mrb[0].mxu0 %v1987
        %v2210 = vpop.f32.mrb[0].mxu0
        %v2211 = vadd.f32 0.0, %v2210
        %v2212 = vpop.f32.mrb[0].mxu0
        %2213 = vmatprep.mubr.f32.mxu0 0.0
        %2214 = vmatmul.mubr.f32.gmra.mrb[0].mxu0 %v1990
        %v2215 = vpop.f32.mrb[0].mxu0
        %v2216 = vadd.f32 0.0, %v2215
        %v2217 = vpop.f32.mrb[0].mxu0
        %2218 = vmatprep.mubr.f32.mxu0 0.0
        %2219 = vmatmul.mubr.f32.gmra.mrb[0].mxu0 %v1993
        %v2220 = vpop.f32.mrb[0].mxu0
        %v2221 = vadd.f32 0.0, %v2220
        %v2222 = vpop.f32.mrb[0].mxu0
        %2223 = vmatprep.mubr.f32.mxu0 0.0
        %2224 = vmatmul.mubr.f32.gmra.mrb[0].mxu0 %v1996
        %v2225 = vpop.f32.mrb[0].mxu0
        %v2226 = vadd.f32 0.0, %v2225
        %v2227 = vpop.f32.mrb[0].mxu0
        %2228 = vmatprep.mubr.f32.mxu0 0.0
        %2229 = vmatmul.mubr.f32.gmra.mrb[0].mxu0 %v1999
        %v2230 = vpop.f32.mrb[0].mxu0
        %v2231 = vadd.f32 0.0, %v2230
        %v2232 = vpop.f32.mrb[0].mxu0
        %2233 = vmatprep.mubr.f32.mxu0 0.0
        %2234 = vmatmul.mubr.f32.gmra.mrb[0].mxu0 %v2002
        %v2235 = vpop.f32.mrb[0].mxu0
        %v2236 = vadd.f32 0.0, %v2235
        %v2237 = vpop.f32.mrb[0].mxu0
        %2238 = vmatprep.mubr.f32.mxu0 0.0
        %2239 = vmatmul.mubr.f32.gmra.mrb[0].mxu0 %v2005
        %v2240 = vpop.f32.mrb[0].mxu0
        %v2241 = vadd.f32 0.0, %v2240
        %v2242 = vpop.f32.mrb[0].mxu0
        %2243 = vmatprep.mubr.f32.mxu0 0.0
        %2244 = vmatmul.mubr.f32.gmra.mrb[0].mxu0 %v2008
        %v2245 = vpop.f32.mrb[0].mxu0
        %v2246 = vadd.f32 0.0, %v2245
        %v2247 = vpop.f32.mrb[0].mxu0
        %2248 = vmatprep.mubr.f32.mxu0 0.0
        %2249 = vmatmul.mubr.f32.gmra.mrb[0].mxu0 %v2011
        %v2250 = vpop.f32.mrb[0].mxu0
        %v2251 = vadd.f32 0.0, %v2250
        %v2252 = vpop.f32.mrb[0].mxu0
        %2253 = vmatprep.mubr.f32.mxu0 0.0
        %2254 = vmatmul.mubr.f32.gmra.mrb[0].mxu0 %v2014
        %v2255 = vpop.f32.mrb[0].mxu0
        %v2256 = vadd.f32 0.0, %v2255
        %v2257 = vpop.f32.mrb[0].mxu0
        %2258 = vmatprep.mubr.f32.mxu0 0.0
        %2259 = vmatmul.mubr.f32.gmra.mrb[0].mxu0 %v2017
        %v2260 = vpop.f32.mrb[0].mxu0
        %v2261 = vadd.f32 0.0, %v2260
        %v2262 = vpop.f32.mrb[0].mxu0
        %2263 = vmatprep.mubr.f32.mxu0 0.0
        %2264 = vmatmul.mubr.f32.gmra.mrb[0].mxu0 %v2020
        %v2265 = vpop.f32.mrb[0].mxu0
        %v2266 = vadd.f32 0.0, %v2265
        %v2267 = vpop.f32.mrb[0].mxu0
        %2268 = vmatprep.mubr.f32.mxu0 0.0
        %2269 = vmatmul.mubr.f32.gmra.mrb[0].mxu0 %v2023
        %v2270 = vpop.f32.mrb[0].mxu0
        %v2271 = vadd.f32 0.0, %v2270
        %v2272 = vpop.f32.mrb[0].mxu0
        %2273 = vdwg.mxu0
        %v2274 = vmul.f32 %v2096, %v1171
        %v2275 = vmul.f32 %v2101, %v1174
        %v2276 = vmul.f32 %v2106, %v1179
        %v2277 = vmul.f32 %v2111, %v1182
        %v2278 = vmul.f32 %v2116, %v1187
        %v2279 = vmul.f32 %v2121, %v1190
        %v2280 = vmul.f32 %v2126, %v1195
        %v2281 = vmul.f32 %v2131, %v1198
        %v2282 = vmul.f32 %v2136, %v1203
        %v2283 = vmul.f32 %v2141, %v1206
        %v2284 = vmul.f32 %v2146, %v1211
        %v2285 = vmul.f32 %v2151, %v1214
        %v2286 = vmul.f32 %v2156, %v1219
        %v2287 = vmul.f32 %v2161, %v1222
        %v2288 = vmul.f32 %v2166, %v1227
        %v2289 = vmul.f32 %v2171, %v1230
        %v2290 = vmul.f32 %v2176, %v1235
        %v2291 = vmul.f32 %v2181, %v1238
        %v2292 = vmul.f32 %v2186, %v1171
        %v2293 = vmul.f32 %v2191, %v1174
        %v2294 = vmul.f32 %v2196, %v1179
        %v2295 = vmul.f32 %v2201, %v1182
        %v2296 = vmul.f32 %v2206, %v1187
        %v2297 = vmul.f32 %v2211, %v1190
        %v2298 = vmul.f32 %v2216, %v1195
        %v2299 = vmul.f32 %v2221, %v1198
        %v2300 = vmul.f32 %v2226, %v1203
        %v2301 = vmul.f32 %v2231, %v1206
        %v2302 = vmul.f32 %v2236, %v1211
        %v2303 = vmul.f32 %v2241, %v1214
        %v2304 = vmul.f32 %v2246, %v1219
        %v2305 = vmul.f32 %v2251, %v1222
        %v2306 = vmul.f32 %v2256, %v1227
        %v2307 = vmul.f32 %v2261, %v1230
        %v2308 = vmul.f32 %v2266, %v1235
        %v2309 = vmul.f32 %v2271, %v1238
        %v2310 = vadd.f32 %v2274, %v2275
        %v2311 = vadd.f32 %v2310, %v2276
        %v2312 = vadd.f32 %v2311, %v2277
        %v2313 = vadd.f32 %v2312, %v2278
        %v2314 = vadd.f32 %v2313, %v2279
        %v2315 = vadd.f32 %v2314, %v2280
        %v2316 = vadd.f32 %v2315, %v2281
        %v2317 = vadd.f32 %v2316, %v2282
        %v2318 = vadd.f32 %v2317, %v2283
        %v2319 = vadd.f32 %v2318, %v2284
        %v2320 = vadd.f32 %v2319, %v2285
        %v2321 = vadd.f32 %v2320, %v2286
        %v2322 = vadd.f32 %v2321, %v2287
        %v2323 = vadd.f32 %v2322, %v2288
        %v2324 = vadd.f32 %v2323, %v2289
        %v2325 = vadd.f32 %v2324, %v2290
        %v2326 = vadd.f32 %v2325, %v2291
        %v2327 = vadd.f32 %v2292, %v2293
        %v2328 = vadd.f32 %v2327, %v2294
        %v2329 = vadd.f32 %v2328, %v2295
        %v2330 = vadd.f32 %v2329, %v2296
        %v2331 = vadd.f32 %v2330, %v2297
        %v2332 = vadd.f32 %v2331, %v2298
        %v2333 = vadd.f32 %v2332, %v2299
        %v2334 = vadd.f32 %v2333, %v2300
        %v2335 = vadd.f32 %v2334, %v2301
        %v2336 = vadd.f32 %v2335, %v2302
        %v2337 = vadd.f32 %v2336, %v2303
        %v2338 = vadd.f32 %v2337, %v2304
        %v2339 = vadd.f32 %v2338, %v2305
        %v2340 = vadd.f32 %v2339, %v2306
        %v2341 = vadd.f32 %v2340, %v2307
        %v2342 = vadd.f32 %v2341, %v2308
        %v2343 = vadd.f32 %v2342, %v2309
        %v2344 = vpack.c.bf16 %v2343, %v2326
        %v2345 = vld [vmem:[#allocation16] sm:$0xf]
        %v2346 = vld [vmem:[#allocation16 + $0x4] sm:$0xf]
        %v2347 = vld [vmem:[#allocation16 + $0x8] sm:$0xf]
        %v2348 = vld [vmem:[#allocation16 + $0xc] sm:$0xf]
        %v2349 = vld [vmem:[#allocation16 + $0x10] sm:$0xf]
        %v2350 = vld [vmem:[#allocation16 + $0x14] sm:$0xf]
        %v2351 = vld [vmem:[#allocation16 + $0x18] sm:$0xf]
        %v2352 = vld [vmem:[#allocation16 + $0x1c] sm:$0xf]
        %v2353 = vld [vmem:[#allocation16 + $0x20] sm:$0xf]
        %v2354 = vld [vmem:[#allocation16 + $0x24] sm:$0xf]
        %v2355 = vld [vmem:[#allocation16 + $0x28] sm:$0xf]
        %v2356 = vld [vmem:[#allocation16 + $0x2c] sm:$0xf]
        %v2357 = vld [vmem:[#allocation16 + $0x30] sm:$0xf]
        %v2358 = vld [vmem:[#allocation16 + $0x34] sm:$0xf]
        %v2359 = vld [vmem:[#allocation16 + $0x38] sm:$0xf]
        %v2360 = vld [vmem:[#allocation16 + $0x3c] sm:$0xf]
        %v2361 = vld [vmem:[#allocation17] sm:$0x1]
        %v2363 = vlaneseq
        %v2364 = vshrl.u32 %v2363, 7
        %v2365 = vsub.s32 0, %v2364
        %v2366 = vrot.slane %v2361, %v2365
        %v2384 = vunpack.c.l.b16 %v2345
        %v2385 = vunpack.c.l.b16 %v2346
        %v2386 = vunpack.c.l.b16 %v2347
        %v2387 = vunpack.c.l.b16 %v2348
        %v2388 = vunpack.c.l.b16 %v2349
        %v2389 = vunpack.c.l.b16 %v2350
        %v2390 = vunpack.c.l.b16 %v2351
        %v2391 = vunpack.c.l.b16 %v2352
        %v2392 = vunpack.c.l.b16 %v2353
        %v2393 = vunpack.c.l.b16 %v2354
        %v2394 = vunpack.c.l.b16 %v2355
        %v2395 = vunpack.c.l.b16 %v2356
        %v2396 = vunpack.c.l.b16 %v2357
        %v2397 = vunpack.c.l.b16 %v2358
        %v2398 = vunpack.c.l.b16 %v2359
        %v2399 = vunpack.c.l.b16 %v2360
        %v2400 = vpack.c.b16 %v2385, %v2384
        %v2401 = vpack.c.b16 %v2387, %v2386
        %v2402 = vpack.c.b16 %v2389, %v2388
        %v2403 = vpack.c.b16 %v2391, %v2390
        %v2404 = vpack.c.b16 %v2393, %v2392
        %v2405 = vpack.c.b16 %v2395, %v2394
        %v2406 = vpack.c.b16 %v2397, %v2396
        %v2407 = vpack.c.b16 %v2399, %v2398
        %2416 = vmatprep.subr.bf16.mxu0 0
        %2417 = vmatpush1.bf16.msra.mxu0 %v2400
        %2418 = vmatprep.subr.bf16.mxu0 0
        %2419 = vmatpush1.bf16.msra.mxu0 %v2401
        %2420 = vmatprep.subr.bf16.mxu0 0
        %2421 = vmatpush1.bf16.msra.mxu0 %v2402
        %2422 = vmatprep.subr.bf16.mxu0 0
        %2423 = vmatpush1.bf16.msra.mxu0 %v2403
        %2424 = vmatprep.subr.bf16.mxu0 0
        %2425 = vmatpush1.bf16.msra.mxu0 %v2404
        %2426 = vmatprep.subr.bf16.mxu0 0
        %2427 = vmatpush1.bf16.msra.mxu0 %v2405
        %2428 = vmatprep.subr.bf16.mxu0 0
        %2429 = vmatpush1.bf16.msra.mxu0 %v2406
        %2430 = vmatprep.subr.bf16.mxu0 0
        %2431 = vmatpush1.bf16.msra.mxu0 %v2407
        %2432 = vmatprep.subr.bf16.mxu0 0
        %2433 = vmatpush1.bf16.msra.mxu0 0
        %2434 = vmatprep.subr.bf16.mxu0 0
        %2435 = vmatpush1.bf16.msra.mxu0 0
        %2436 = vmatprep.subr.bf16.mxu0 0
        %2437 = vmatpush1.bf16.msra.mxu0 0
        %2438 = vmatprep.subr.bf16.mxu0 0
        %2439 = vmatpush1.bf16.msra.mxu0 0
        %2440 = vmatprep.subr.bf16.mxu0 0
        %2441 = vmatpush1.bf16.msra.mxu0 0
        %2442 = vmatprep.subr.bf16.mxu0 0
        %2443 = vmatpush1.bf16.msra.mxu0 0
        %2444 = vmatprep.subr.bf16.mxu0 0
        %2445 = vmatpush1.bf16.msra.mxu0 0
        %2446 = vmatprep.subr.bf16.mxu0 0
        %2447 = vmatpush1.bf16.msra.mxu0 0
        %2448 = vmatprep.mubr.bf16.mxu0 0
        %2449 = vmatmul.mubr.bf16.gmra.mrb[0].mxu0 %v2344
        %v2450 = vpop.f32.mrb[0].mxu0
        %v2451 = vadd.f32 %v2366, %v2450
        %v2452 = vpop.f32.mrb[0].mxu0
        %v2453 = vpop.f32.mrb[0].mxu0
        %v2454 = vadd.f32 %v2366, %v2453
        %v2455 = vpop.f32.mrb[0].mxu0
        %2456 = vdwg.mxu0
        %vm2457 = vcmask 523264
        %2458 = vst.msk [vmem:[%s499] sm:$0xff] %vm2457, %v2451
        %2459 = vst.msk [vmem:[%s499 + $0x8] sm:$0xff] %vm2457, %v2454
        %s2460 = sand.u32 %s255, 1
        %s2461 = scalar_lea.sflag [#allocation4], %s2460
        %s2462 = sand.u32 %s255, 1
        %s2463 = smul.addr %s2462, 16
        %s2464 = scalar_lea.vmem [#allocation19], %s2463
        // Predicated region
        $region101: #{attention_pool_2d.1} parent=59 // pred_check
          %p2465 = pneg %p265
        $region102: #{attention_pool_2d.1} parent=59 // pred_check_branch
          %2467 = sbr.rel (%p2465) target = $region104
        $region103: #{attention_pool_2d.1} parent=59 // pred_region
          %s2469 = ssub.s32 256, 256
          %2470 = vsyncadd %s2461, %s2469
          %s2471 = smul.addr %s32, 128
          %s2472 = scalar_lea.hbm %s10, %s2471
          %s2473 = sshll.u32 %s2464, 4
          %s2474 = int_to_ptr.vmem [resolvable:$true] %s2473
          %2479 = dma.vmem_to_hbm [thread:$0]  %s2474, 256, %s2472, %s2461, 128, 256, 8
        $region104: #{attention_pool_2d.1} parent=59 // pred_fallthru
          _
      $region60: #{attention_pool_2d.1} parent=5 // pred_fallthru
        _
      %p2480 = scmp.le.s32.totalorder 2, %s27
      // Predicated region
      $region105: #{attention_pool_2d.1} parent=5 // pred_check
        %p2481 = pneg %p2480
      $region106: #{attention_pool_2d.1} parent=5 // pred_check_branch
        %2483 = sbr.rel (%p2481) target = $region108
      $region107: #{attention_pool_2d.1} parent=5 // pred_region
        %s2484 = ssub.s32 %s27, 2
        // Predicated region
        $region109: #{attention_pool_2d.1} parent=107 // pred_check
          %p2485 = pneg %p271
        $region110: #{attention_pool_2d.1} parent=107 // pred_check_branch
          %2487 = sbr.rel (%p2485) target = $region112
        $region111: #{attention_pool_2d.1} parent=107 // pred_region
          %s2488 = sand.u32 %s256, 1
          %s2489 = scalar_lea.sflag [#allocation4], %s2488
          %s2490 = sand.u32 %s256, 1
          %s2491 = smul.addr %s2490, 16
          %s2492 = scalar_lea.vmem [#allocation19], %s2491
          %2493 = dma.done %s2489, 256
        $region112: #{attention_pool_2d.1} parent=107 // pred_fallthru
          _
      $region108: #{attention_pool_2d.1} parent=5 // pred_fallthru
        _
    $region6: #{attention_pool_2d.1} parent=1 // loop_footer
      %s31 = sadd.s32 1, %s27
    $region7: #{attention_pool_2d.1} parent=1 // loop_footer_branch
      %26 = sbr.rel target = $region3
    $region8: #{attention_pool_2d.1} parent=1 // loop_exit
      _
    %2494 = vsyncpa [#allocation3], 1
    %s2495 = scalar_lea.sflag [#allocation3], 1
    %2496 = vsyncpa %s2495, 1
    %2497 = vsyncpa [#allocation6], 1
    %2498 = vsyncpa [#allocation9], 1
    %2499 = vsyncpa [#allocation12], 1
    %2500 = vsyncpa [#allocation15], 1
    %2501 = vsyncpa [#allocation18], 1
    %2502 = vsyncpa [#allocation4], 1
    %s2503 = scalar_lea.sflag [#allocation4], 1
    %2504 = vsyncpa %s2503, 1

</llo_original>
